<compile_context>
chip_gen: v5e
topology: v5e:2x2
jax: 0.10.0
libtpu: 0.0.40
codegen_flags: <defaults>
</compile_context>

<pallas_src>
import functools

import jax
import jax.numpy as jnp
from jax import lax
from jax.experimental import pallas as pl
from jax.experimental.pallas import tpu as pltpu


def _round_up(x, m):
    return (x + m - 1) // m * m


def _cdiv(a, b):
    return -(-a // b)


# ----------------------------------------------------------------------------
# Pallas kernel: fused implicit-GEMM dynamic conv + region-masked sum for one
# (sample, lane-tile) grid point.
# ----------------------------------------------------------------------------
def _drconv_kernel(w_ref, xa_ref, xh_ref, m_ref, o_ref, *,
                   region_num, cout_p, ksize, w_padded, tile):
    R, Cp, k = region_num, cout_p, ksize

    xa = xa_ref[0]                                  # (Cin_p, T)      bf16
    xh = xh_ref[0]                                  # (Cin_p, Thalo)  bf16 halo
    xfull = jnp.concatenate([xa, xh], axis=-1)      # (Cin_p, T + Thalo)

    # implicit GEMM: k*k shifted-window matmuls (MXU), f32 accumulation.
    # Output column t of this tile needs xflat[t + dy*Wp + dx] for tap (dy,dx),
    # i.e. a static lane-offset view of the concatenated (tile + halo) buffer.
    acc = None
    for dy in range(k):
        for dx in range(k):
            d = dy * w_padded + dx
            win = xfull[:, d:d + tile]              # (Cin_p, T)
            w_tap = w_ref[0, dy * k + dx]           # (R*Cp, Cin_p)
            part = jnp.dot(w_tap, win, preferred_element_type=jnp.float32)
            acc = part if acc is None else acc + part

    # region-weighted sum: out[j, t] = sum_r acc[r*Cp + j, t] * m[r, t].
    # Cp is a multiple of 8 -> every region slice is sublane-tile aligned, so
    # these are R cheap VPU madds co-issuing under the matmuls above.
    m = m_ref[0].astype(jnp.float32)                # (R, T), bf16 -> f32
    out = acc[0:Cp, :] * m[0:1, :]
    for r in range(1, R):
        out = out + acc[r * Cp:(r + 1) * Cp, :] * m[r:r + 1, :]
    o_ref[0] = out.astype(o_ref.dtype)


def _choose_tile(L, thalo, cin_p, r, rc_p, cout_p, kk, out_itemsize, batch):
    """Largest lane tile (multiple of thalo, hence of 128) whose per-step
    working set fits a conservative VMEM budget, chosen to minimise last-tile
    padding.  thalo must divide the tile so the halo block index is exact."""
    budget = 24 * 1024 * 1024  # fits v7x (64 MiB phys) with headroom

    def step_bytes(t):
        bf = 2
        blocks = 2 * (cin_p * t * bf          # x tile (double buffered)
                      + cin_p * thalo * bf    # x halo
                      + r * t * bf            # mask
                      + kk * rc_p * cin_p * bf  # dyn filters (resident)
                      + cout_p * t * out_itemsize)  # output
        interm = (cin_p * (t + thalo) * bf    # concatenated window buffer
                  + cin_p * t * bf            # one shifted window
                  + rc_p * t * 4              # f32 accumulator
                  + cout_p * t * 4)           # f32 region sum
        return blocks + interm

    n = 2 if (batch == 1 and L > thalo) else 1   # keep >=2 tiles for v7x 2-TC
    max_n = max(1, _cdiv(L, thalo))
    while True:
        tile = max(_round_up(_cdiv(L, n), thalo), thalo)
        if step_bytes(tile) <= budget or tile == thalo or n >= max_n:
            break
        n += 1
    n_tiles = _cdiv(L, tile)
    return tile, n_tiles, step_bytes(tile)


def _dynamic_region_conv(dyn_w, xflat, mask, *, region_num, cout_p, ksize,
                         w_padded, tile, thalo, n_tiles, out_dtype,
                         cost_estimate, vmem_limit_bytes):
    """dyn_w: (B, k*k, R*Cout_p, Cin_p) bf16; xflat: (B, Cin_p, L_in) bf16;
    mask: (B, R, L_out) bf16.  L_out = n_tiles*tile, L_in = L_out + thalo."""
    B, kk, rc_p, cin_p = dyn_w.shape
    L_out = n_tiles * tile
    ratio = tile // thalo  # thalo divides tile by construction

    kernel = functools.partial(
        _drconv_kernel, region_num=region_num, cout_p=cout_p, ksize=ksize,
        w_padded=w_padded, tile=tile)

    return pl.pallas_call(
        kernel,
        out_shape=jax.ShapeDtypeStruct((B, cout_p, L_out), out_dtype),
        grid=(B, n_tiles),
        in_specs=[
            # dynamic filters: resident across the lane-tile loop per sample
            pl.BlockSpec((1, kk, rc_p, cin_p), lambda b, t: (b, 0, 0, 0)),
            # flattened padded image: main lane tile
            pl.BlockSpec((1, cin_p, tile), lambda b, t: (b, 0, t)),
            # small halo block (next thalo lanes) of the same array
            pl.BlockSpec((1, cin_p, thalo), lambda b, t: (b, 0, (t + 1) * ratio)),
            # region mask (un-broadcast over Cout), bf16
            pl.BlockSpec((1, region_num, tile), lambda b, t: (b, 0, t)),
        ],
        out_specs=pl.BlockSpec((1, cout_p, tile), lambda b, t: (b, 0, t)),
        compiler_params=pltpu.CompilerParams(
            dimension_semantics=("parallel", "parallel"),
            vmem_limit_bytes=vmem_limit_bytes),
        cost_estimate=cost_estimate,
    )(dyn_w, xflat, xflat, mask)


# ----------------------------------------------------------------------------
# Plain-JAX glue: kernel-generation branch (tiny compute on k x k maps).
# ----------------------------------------------------------------------------
def adaptive_avg_pool2d(x, out_size):
    """Matches torch.nn.AdaptiveAvgPool2d bin boundaries exactly."""
    _, _, H, W = x.shape

    def pool(arr, size, axis):
        pieces = []
        for i in range(out_size):
            s = (i * size) // out_size
            e = -((-(i + 1) * size) // out_size)  # ceil
            sl = lax.slice_in_dim(arr, s, e, axis=axis)
            pieces.append(jnp.mean(sl, axis=axis, keepdims=True))
        return jnp.concatenate(pieces, axis=axis)

    x = pool(x, H, 2)
    x = pool(x, W, 3)
    return x


def generate_dynamic_kernel(x, params, *, region_num, in_channels, out_channels,
                            kernel_size):
    """Replicates self.conv_kernel: AdaptiveAvgPool -> 1x1 conv -> sigmoid ->
    grouped 1x1 conv.  Returns (B, R*Cin*Cout, k, k)."""
    R, Cin, Cout, k = region_num, in_channels, out_channels, kernel_size
    w1, b1, w2, b2 = params
    pooled = adaptive_avg_pool2d(x, k)                                  # (B,Cin,k,k)
    t = jnp.einsum("oc,bchw->bohw", w1[:, :, 0, 0], pooled)
    t = t + b1[None, :, None, None]
    t = jax.nn.sigmoid(t)                                               # (B,R*R,k,k)
    B = x.shape[0]
    t_g = t.reshape(B, R, R, k, k)                                      # groups
    w2_g = w2[:, :, 0, 0].reshape(R, Cin * Cout, R)
    kdyn = jnp.einsum("goi,bgihw->bgohw", w2_g, t_g)
    kdyn = kdyn + b2.reshape(1, R, Cin * Cout, 1, 1)
    return kdyn.reshape(B, R * Cin * Cout, k, k)


# ----------------------------------------------------------------------------
# Full DRConv2d_phy forward.
# ----------------------------------------------------------------------------
def drconv2d_phy_forward(x, phy_mask, params, *, region_num, in_channels,
                         out_channels, kernel_size=3, stride=1, padding=1):
    # TODO(synk): extra **kwargs forwarded to F.conv2d (dilation, bias) and
    # stride != 1 / non-'same' padding are not supported by the fused path.
    B, Cin, H, W = x.shape
    R, Cout, k = region_num, out_channels, kernel_size
    out_dtype = x.dtype
    out_itemsize = jnp.dtype(out_dtype).itemsize

    # The module multiplies the conv output with a (B,R,1,H,W) mask, which
    # already forces a size-preserving ('same', stride-1) convolution.
    assert stride == 1 and 2 * padding == k - 1, (
        "fused implicit-GEMM path assumes stride=1 and 2*padding == k-1")
    Ho, Wo = H, W
    Hp, Wp = H + 2 * padding, W + 2 * padding
    assert phy_mask.shape[-2:] == (Ho, Wo), (
        "phy_mask spatial dims must equal conv output dims (module assumption)")

    # 1) dynamic per-sample filters (plain JAX -- negligible compute), laid out
    #    as (B, k*k, R*Cout_p, Cin_p) with per-region Cout padded to 8 and Cin
    #    padded to 8 so the kernel's acc slices / RHS are sublane aligned.
    Cout_p = _round_up(Cout, 8)
    Cin_p = _round_up(Cin, 8)
    RCp = R * Cout_p
    kdyn = generate_dynamic_kernel(
        x, params, region_num=R, in_channels=Cin, out_channels=Cout, kernel_size=k
    )  # (B, R*Cin*Cout, k, k), channel order (r, j, c)
    w6 = kdyn.reshape(B, R, Cout, Cin, k, k).astype(jnp.bfloat16)
    w6 = jnp.transpose(w6, (0, 4, 5, 1, 2, 3))        # (B, kh, kw, R, Cout, Cin)
    w6 = jnp.pad(w6, ((0, 0), (0, 0), (0, 0), (0, 0),
                      (0, Cout_p - Cout), (0, Cin_p - Cin)))
    dyn_w = w6.reshape(B, k * k, RCp, Cin_p)

    # 2) compact bf16, spatially padded image, flattened row-major over the
    #    padded-width grid (NO k^2 im2col inflation; cast before materialising).
    xp = jnp.pad(x.astype(jnp.bfloat16),
                 ((0, 0), (0, Cin_p - Cin), (padding, padding), (padding, padding)))
    xflat = xp.reshape(B, Cin_p, Hp * Wp)

    # 3) region mask on the padded-width grid, bf16 (half the DMA bytes);
    #    padded columns are zero so they contribute nothing before cropping.
    m4 = phy_mask.reshape(B, R, Ho, Wo).astype(jnp.bfloat16)
    m4 = jnp.pad(m4, ((0, 0), (0, 0), (0, 0), (0, Wp - Wo)))
    mflat = m4.reshape(B, R, Ho * Wp)

    # 4) lane tiling: halo = largest tap shift; tile from a VMEM budget.
    L = Ho * Wp
    halo = (k - 1) * Wp + (k - 1)
    thalo = _round_up(max(halo, 1), 128)
    tile, n_tiles, step_bytes = _choose_tile(
        L, thalo, Cin_p, R, RCp, Cout_p, k * k, out_itemsize, B)
    L_out = n_tiles * tile
    L_in = L_out + thalo
    xflat = jnp.pad(xflat, ((0, 0), (0, 0), (0, L_in - Hp * Wp)))
    mflat = jnp.pad(mflat, ((0, 0), (0, 0), (0, L_out - L)))

    cost = pl.CostEstimate(
        flops=2 * B * RCp * Cin_p * k * k * L_out + 2 * B * R * Cout_p * L_out,
        transcendentals=0,
        bytes_accessed=(B * k * k * RCp * Cin_p * 2
                        + B * n_tiles * (tile + thalo) * Cin_p * 2
                        + B * R * L_out * 2
                        + B * Cout_p * L_out * out_itemsize))
    vmem_limit = max(32 * 1024 * 1024, int(step_bytes * 1.25))

    # 5) Pallas hot path: fused implicit-GEMM dyn conv + region-weighted sum.
    out = _dynamic_region_conv(
        dyn_w, xflat, mflat,
        region_num=R, cout_p=Cout_p, ksize=k, w_padded=Wp,
        tile=tile, thalo=thalo, n_tiles=n_tiles, out_dtype=out_dtype,
        cost_estimate=cost, vmem_limit_bytes=vmem_limit)

    # 6) drop padded filters / invalid padded-width columns.
    out = out[:, :Cout, :L].reshape(B, Cout, Ho, Wp)[:, :, :, :Wo]
    return out


# ----------------------------------------------------------------------------
# Pure-JAX reference (mirrors xcorr_fast: grouped conv with groups=B).
# ----------------------------------------------------------------------------
def _reference(x, phy_mask, params, *, region_num, in_channels, out_channels,
               kernel_size, stride, padding, quantize_bf16=False):
    B, Cin, H, W = x.shape
    R, Cout, k = region_num, out_channels, kernel_size
    kdyn = generate_dynamic_kernel(
        x, params, region_num=R, in_channels=Cin, out_channels=Cout, kernel_size=k
    )
    mask = phy_mask
    if quantize_bf16:
        # mimic the kernel's bf16 operand quantization (f32 accumulation kept)
        kdyn = kdyn.astype(jnp.bfloat16).astype(jnp.float32)
        x = x.astype(jnp.bfloat16).astype(jnp.float32)
        mask = mask.astype(jnp.bfloat16).astype(jnp.float32)
    pk = kdyn.reshape(B * R * Cout, Cin, k, k)
    px = x.reshape(1, B * Cin, H, W)
    po = lax.conv_general_dilated(
        px, pk,
        window_strides=(stride, stride),
        padding=((padding, padding), (padding, padding)),
        dimension_numbers=("NCHW", "OIHW", "NCHW"),
        feature_group_count=B,
        precision=lax.Precision.HIGHEST,
    )
    Ho, Wo = po.shape[2], po.shape[3]
    po = po.reshape(B, R, Cout, Ho, Wo)
    return jnp.sum(po * mask, axis=1)


if __name__ == "__main__":
    # small test config consistent with the module defaults
    B, Cin, Cout, R, k = 2, 4, 4, 4, 3
    H = W = 16
    stride, padding = 1, 1

    key = jax.random.PRNGKey(0)
    k1, k2, k3, k4, k5, k6 = jax.random.split(key, 6)

    # deterministic synthetic parameters (shapes from DRConv2d_phy.__init__)
    w1 = 0.1 * jax.random.normal(k1, (R * R, Cin, 1, 1), jnp.float32)
    b1 = 0.1 * jax.random.normal(k2, (R * R,), jnp.float32)
    w2 = 0.1 * jax.random.normal(k3, (R * Cin * Cout, R, 1, 1), jnp.float32)
    b2 = 0.1 * jax.random.normal(k4, (R * Cin * Cout,), jnp.float32)
    params = (w1, b1, w2, b2)

    x = jax.random.normal(k5, (B, Cin, H, W), jnp.float32)
    phy_mask = jax.nn.softmax(
        jax.random.normal(k6, (B, R, 1, H, W), jnp.float32), axis=1
    )

    fwd = jax.jit(functools.partial(
        drconv2d_phy_forward,
        region_num=R, in_channels=Cin, out_channels=Cout,
        kernel_size=k, stride=stride, padding=padding,
    ))
    out = fwd(x, phy_mask, params)
    out = jax.block_until_ready(out)
    assert out.shape == (B, Cout, H, W), out.shape

    # tight check vs a reference with identically bf16-quantized operands
    ref_q = _reference(
        x, phy_mask, params,
        region_num=R, in_channels=Cin, out_channels=Cout,
        kernel_size=k, stride=stride, padding=padding, quantize_bf16=True,
    )
    ref_q = jax.block_until_ready(ref_q)
    err_q = float(jnp.max(jnp.abs(out.astype(jnp.float32) - ref_q)))
    assert err_q < 1e-3, f"mismatch vs bf16-quantized reference: {err_q}"

    # loose check vs the pure-f32 reference (bf16 operand quantization budget)
    ref = _reference(
        x, phy_mask, params,
        region_num=R, in_channels=Cin, out_channels=Cout,
        kernel_size=k, stride=stride, padding=padding, quantize_bf16=False,
    )
    ref = jax.block_until_ready(ref)
    err = float(jnp.max(jnp.abs(out.astype(jnp.float32) - ref)))
    assert err < 7e-2, f"mismatch vs f32 reference: {err}"

    print("KERNEL_OK")
</pallas_src>

<mosaic_0001>
module attributes {stable_mosaic.version = 11 : i64} {
  func.func @_drconv_kernel(%arg0: i32, %arg1: i32, %arg2: memref<1x9x32x8xbf16, #tpu.memory_space<vmem>>, %arg3: memref<1x8x384xbf16, #tpu.memory_space<vmem>>, %arg4: memref<1x8x128xbf16, #tpu.memory_space<vmem>>, %arg5: memref<1x4x384xbf16, #tpu.memory_space<vmem>>, %arg6: memref<1x8x384xf32, #tpu.memory_space<vmem>>) attributes {dimension_semantics = [#tpu.dimension_semantics<parallel>, #tpu.dimension_semantics<parallel>], iteration_bounds = array<i64: 2, 1>, scalar_prefetch = 0 : i64, scratch_operands = 0 : i64, tpu.core_type = #tpu.core_type<tc>, window_params = [{transform_indices = @transform_0, window_bounds = array<i64: 1, 9, 32, 8>}, {transform_indices = @transform_1, window_bounds = array<i64: 1, 8, 384>}, {transform_indices = @transform_2, window_bounds = array<i64: 1, 8, 128>}, {transform_indices = @transform_3, window_bounds = array<i64: 1, 4, 384>}, {transform_indices = @transform_4, window_bounds = array<i64: 1, 8, 384>}]} {
    %c0 = arith.constant 0 : index
    %c0_0 = arith.constant 0 : index
    %c0_1 = arith.constant 0 : index
    %0 = vector.load %arg3[%c0, %c0_0, %c0_1] : memref<1x8x384xbf16, #tpu.memory_space<vmem>>, vector<1x8x384xbf16>
    %1 = vector.shape_cast %0 : vector<1x8x384xbf16> to vector<8x384xbf16>
    %c0_2 = arith.constant 0 : index
    %c0_3 = arith.constant 0 : index
    %c0_4 = arith.constant 0 : index
    %2 = vector.load %arg4[%c0_2, %c0_3, %c0_4] : memref<1x8x128xbf16, #tpu.memory_space<vmem>>, vector<1x8x128xbf16>
    %3 = vector.shape_cast %2 : vector<1x8x128xbf16> to vector<8x128xbf16>
    %4 = tpu.concatenate %1, %3 in 1 : vector<8x384xbf16>, vector<8x128xbf16> -> vector<8x512xbf16>
    %5 = vector.extract_strided_slice %4 {offsets = [0, 0], sizes = [8, 384], strides = [1, 1]} : vector<8x512xbf16> to vector<8x384xbf16>
    %c0_5 = arith.constant 0 : index
    %c0_6 = arith.constant 0 : index
    %c0_7 = arith.constant 0 : index
    %c0_8 = arith.constant 0 : index
    %6 = vector.load %arg2[%c0_5, %c0_6, %c0_7, %c0_8] : memref<1x9x32x8xbf16, #tpu.memory_space<vmem>>, vector<1x1x32x8xbf16>
    %7 = vector.shape_cast %6 : vector<1x1x32x8xbf16> to vector<32x8xbf16>
    %cst = arith.constant dense<0.000000e+00> : vector<32x384xf32>
    %8 = tpu.matmul %7, %5, %cst {dimension_numbers = #tpu.dot_dimension_numbers<[1], [0], [0], [1], [0, 0, 1, 1], [], []>} : vector<32x8xbf16>, vector<8x384xbf16>, vector<32x384xf32> -> vector<32x384xf32>
    %9 = vector.extract_strided_slice %4 {offsets = [0, 1], sizes = [8, 384], strides = [1, 1]} : vector<8x512xbf16> to vector<8x384xbf16>
    %c0_9 = arith.constant 0 : index
    %c1 = arith.constant 1 : index
    %c0_10 = arith.constant 0 : index
    %c0_11 = arith.constant 0 : index
    %10 = vector.load %arg2[%c0_9, %c1, %c0_10, %c0_11] : memref<1x9x32x8xbf16, #tpu.memory_space<vmem>>, vector<1x1x32x8xbf16>
    %11 = vector.shape_cast %10 : vector<1x1x32x8xbf16> to vector<32x8xbf16>
    %cst_12 = arith.constant dense<0.000000e+00> : vector<32x384xf32>
    %12 = tpu.matmul %11, %9, %cst_12 {dimension_numbers = #tpu.dot_dimension_numbers<[1], [0], [0], [1], [0, 0, 1, 1], [], []>} : vector<32x8xbf16>, vector<8x384xbf16>, vector<32x384xf32> -> vector<32x384xf32>
    %13 = arith.addf %8, %12 : vector<32x384xf32>
    %14 = vector.extract_strided_slice %4 {offsets = [0, 2], sizes = [8, 384], strides = [1, 1]} : vector<8x512xbf16> to vector<8x384xbf16>
    %c0_13 = arith.constant 0 : index
    %c2 = arith.constant 2 : index
    %c0_14 = arith.constant 0 : index
    %c0_15 = arith.constant 0 : index
    %15 = vector.load %arg2[%c0_13, %c2, %c0_14, %c0_15] : memref<1x9x32x8xbf16, #tpu.memory_space<vmem>>, vector<1x1x32x8xbf16>
    %16 = vector.shape_cast %15 : vector<1x1x32x8xbf16> to vector<32x8xbf16>
    %cst_16 = arith.constant dense<0.000000e+00> : vector<32x384xf32>
    %17 = tpu.matmul %16, %14, %cst_16 {dimension_numbers = #tpu.dot_dimension_numbers<[1], [0], [0], [1], [0, 0, 1, 1], [], []>} : vector<32x8xbf16>, vector<8x384xbf16>, vector<32x384xf32> -> vector<32x384xf32>
    %18 = arith.addf %13, %17 : vector<32x384xf32>
    %19 = vector.extract_strided_slice %4 {offsets = [0, 18], sizes = [8, 384], strides = [1, 1]} : vector<8x512xbf16> to vector<8x384xbf16>
    %c0_17 = arith.constant 0 : index
    %c3 = arith.constant 3 : index
    %c0_18 = arith.constant 0 : index
    %c0_19 = arith.constant 0 : index
    %20 = vector.load %arg2[%c0_17, %c3, %c0_18, %c0_19] : memref<1x9x32x8xbf16, #tpu.memory_space<vmem>>, vector<1x1x32x8xbf16>
    %21 = vector.shape_cast %20 : vector<1x1x32x8xbf16> to vector<32x8xbf16>
    %cst_20 = arith.constant dense<0.000000e+00> : vector<32x384xf32>
    %22 = tpu.matmul %21, %19, %cst_20 {dimension_numbers = #tpu.dot_dimension_numbers<[1], [0], [0], [1], [0, 0, 1, 1], [], []>} : vector<32x8xbf16>, vector<8x384xbf16>, vector<32x384xf32> -> vector<32x384xf32>
    %23 = arith.addf %18, %22 : vector<32x384xf32>
    %24 = vector.extract_strided_slice %4 {offsets = [0, 19], sizes = [8, 384], strides = [1, 1]} : vector<8x512xbf16> to vector<8x384xbf16>
    %c0_21 = arith.constant 0 : index
    %c4 = arith.constant 4 : index
    %c0_22 = arith.constant 0 : index
    %c0_23 = arith.constant 0 : index
    %25 = vector.load %arg2[%c0_21, %c4, %c0_22, %c0_23] : memref<1x9x32x8xbf16, #tpu.memory_space<vmem>>, vector<1x1x32x8xbf16>
    %26 = vector.shape_cast %25 : vector<1x1x32x8xbf16> to vector<32x8xbf16>
    %cst_24 = arith.constant dense<0.000000e+00> : vector<32x384xf32>
    %27 = tpu.matmul %26, %24, %cst_24 {dimension_numbers = #tpu.dot_dimension_numbers<[1], [0], [0], [1], [0, 0, 1, 1], [], []>} : vector<32x8xbf16>, vector<8x384xbf16>, vector<32x384xf32> -> vector<32x384xf32>
    %28 = arith.addf %23, %27 : vector<32x384xf32>
    %29 = vector.extract_strided_slice %4 {offsets = [0, 20], sizes = [8, 384], strides = [1, 1]} : vector<8x512xbf16> to vector<8x384xbf16>
    %c0_25 = arith.constant 0 : index
    %c5 = arith.constant 5 : index
    %c0_26 = arith.constant 0 : index
    %c0_27 = arith.constant 0 : index
    %30 = vector.load %arg2[%c0_25, %c5, %c0_26, %c0_27] : memref<1x9x32x8xbf16, #tpu.memory_space<vmem>>, vector<1x1x32x8xbf16>
    %31 = vector.shape_cast %30 : vector<1x1x32x8xbf16> to vector<32x8xbf16>
    %cst_28 = arith.constant dense<0.000000e+00> : vector<32x384xf32>
    %32 = tpu.matmul %31, %29, %cst_28 {dimension_numbers = #tpu.dot_dimension_numbers<[1], [0], [0], [1], [0, 0, 1, 1], [], []>} : vector<32x8xbf16>, vector<8x384xbf16>, vector<32x384xf32> -> vector<32x384xf32>
    %33 = arith.addf %28, %32 : vector<32x384xf32>
    %34 = vector.extract_strided_slice %4 {offsets = [0, 36], sizes = [8, 384], strides = [1, 1]} : vector<8x512xbf16> to vector<8x384xbf16>
    %c0_29 = arith.constant 0 : index
    %c6 = arith.constant 6 : index
    %c0_30 = arith.constant 0 : index
    %c0_31 = arith.constant 0 : index
    %35 = vector.load %arg2[%c0_29, %c6, %c0_30, %c0_31] : memref<1x9x32x8xbf16, #tpu.memory_space<vmem>>, vector<1x1x32x8xbf16>
    %36 = vector.shape_cast %35 : vector<1x1x32x8xbf16> to vector<32x8xbf16>
    %cst_32 = arith.constant dense<0.000000e+00> : vector<32x384xf32>
    %37 = tpu.matmul %36, %34, %cst_32 {dimension_numbers = #tpu.dot_dimension_numbers<[1], [0], [0], [1], [0, 0, 1, 1], [], []>} : vector<32x8xbf16>, vector<8x384xbf16>, vector<32x384xf32> -> vector<32x384xf32>
    %38 = arith.addf %33, %37 : vector<32x384xf32>
    %39 = vector.extract_strided_slice %4 {offsets = [0, 37], sizes = [8, 384], strides = [1, 1]} : vector<8x512xbf16> to vector<8x384xbf16>
    %c0_33 = arith.constant 0 : index
    %c7 = arith.constant 7 : index
    %c0_34 = arith.constant 0 : index
    %c0_35 = arith.constant 0 : index
    %40 = vector.load %arg2[%c0_33, %c7, %c0_34, %c0_35] : memref<1x9x32x8xbf16, #tpu.memory_space<vmem>>, vector<1x1x32x8xbf16>
    %41 = vector.shape_cast %40 : vector<1x1x32x8xbf16> to vector<32x8xbf16>
    %cst_36 = arith.constant dense<0.000000e+00> : vector<32x384xf32>
    %42 = tpu.matmul %41, %39, %cst_36 {dimension_numbers = #tpu.dot_dimension_numbers<[1], [0], [0], [1], [0, 0, 1, 1], [], []>} : vector<32x8xbf16>, vector<8x384xbf16>, vector<32x384xf32> -> vector<32x384xf32>
    %43 = arith.addf %38, %42 : vector<32x384xf32>
    %44 = vector.extract_strided_slice %4 {offsets = [0, 38], sizes = [8, 384], strides = [1, 1]} : vector<8x512xbf16> to vector<8x384xbf16>
    %c0_37 = arith.constant 0 : index
    %c8 = arith.constant 8 : index
    %c0_38 = arith.constant 0 : index
    %c0_39 = arith.constant 0 : index
    %45 = vector.load %arg2[%c0_37, %c8, %c0_38, %c0_39] : memref<1x9x32x8xbf16, #tpu.memory_space<vmem>>, vector<1x1x32x8xbf16>
    %46 = vector.shape_cast %45 : vector<1x1x32x8xbf16> to vector<32x8xbf16>
    %cst_40 = arith.constant dense<0.000000e+00> : vector<32x384xf32>
    %47 = tpu.matmul %46, %44, %cst_40 {dimension_numbers = #tpu.dot_dimension_numbers<[1], [0], [0], [1], [0, 0, 1, 1], [], []>} : vector<32x8xbf16>, vector<8x384xbf16>, vector<32x384xf32> -> vector<32x384xf32>
    %48 = arith.addf %43, %47 : vector<32x384xf32>
    %c0_41 = arith.constant 0 : index
    %c0_42 = arith.constant 0 : index
    %c0_43 = arith.constant 0 : index
    %49 = vector.load %arg5[%c0_41, %c0_42, %c0_43] : memref<1x4x384xbf16, #tpu.memory_space<vmem>>, vector<1x4x384xbf16>
    %50 = vector.shape_cast %49 : vector<1x4x384xbf16> to vector<4x384xbf16>
    %51 = arith.extf %50 : vector<4x384xbf16> to vector<4x384xf32>
    %52 = vector.extract_strided_slice %48 {offsets = [0, 0], sizes = [8, 384], strides = [1, 1]} : vector<32x384xf32> to vector<8x384xf32>
    %53 = vector.extract_strided_slice %51 {offsets = [0, 0], sizes = [1, 384], strides = [1, 1]} : vector<4x384xf32> to vector<1x384xf32>
    %54 = vector.broadcast %53 : vector<1x384xf32> to vector<8x384xf32>
    %55 = arith.mulf %52, %54 : vector<8x384xf32>
    %56 = vector.extract_strided_slice %48 {offsets = [8, 0], sizes = [8, 384], strides = [1, 1]} : vector<32x384xf32> to vector<8x384xf32>
    %57 = vector.extract_strided_slice %51 {offsets = [1, 0], sizes = [1, 384], strides = [1, 1]} : vector<4x384xf32> to vector<1x384xf32>
    %58 = vector.broadcast %57 : vector<1x384xf32> to vector<8x384xf32>
    %59 = arith.mulf %56, %58 : vector<8x384xf32>
    %60 = arith.addf %55, %59 : vector<8x384xf32>
    %61 = vector.extract_strided_slice %48 {offsets = [16, 0], sizes = [8, 384], strides = [1, 1]} : vector<32x384xf32> to vector<8x384xf32>
    %62 = vector.extract_strided_slice %51 {offsets = [2, 0], sizes = [1, 384], strides = [1, 1]} : vector<4x384xf32> to vector<1x384xf32>
    %63 = vector.broadcast %62 : vector<1x384xf32> to vector<8x384xf32>
    %64 = arith.mulf %61, %63 : vector<8x384xf32>
    %65 = arith.addf %60, %64 : vector<8x384xf32>
    %66 = vector.extract_strided_slice %48 {offsets = [24, 0], sizes = [8, 384], strides = [1, 1]} : vector<32x384xf32> to vector<8x384xf32>
    %67 = vector.extract_strided_slice %51 {offsets = [3, 0], sizes = [1, 384], strides = [1, 1]} : vector<4x384xf32> to vector<1x384xf32>
    %68 = vector.broadcast %67 : vector<1x384xf32> to vector<8x384xf32>
    %69 = arith.mulf %66, %68 : vector<8x384xf32>
    %70 = arith.addf %65, %69 : vector<8x384xf32>
    %c0_44 = arith.constant 0 : index
    %c0_45 = arith.constant 0 : index
    %c0_46 = arith.constant 0 : index
    %71 = vector.load %arg6[%c0_44, %c0_45, %c0_46] : memref<1x8x384xf32, #tpu.memory_space<vmem>>, vector<1x8x384xf32>
    %72 = vector.shape_cast %71 : vector<1x8x384xf32> to vector<8x384xf32>
    %73 = vector.shape_cast %70 : vector<8x384xf32> to vector<1x8x384xf32>
    tpu.vector_store %arg6[%c0_44, %c0_45, %c0_46], %73 {strides = array<i32>} : memref<1x8x384xf32, #tpu.memory_space<vmem>>, vector<1x8x384xf32>,
    return
  }
  func.func @transform_0(%arg0: i32, %arg1: i32) -> (i32, i32, i32, i32) {
    %c0_i32 = arith.constant 0 : i32
    %c0_i32_0 = arith.constant 0 : i32
    %c0_i32_1 = arith.constant 0 : i32
    %c0_i32_2 = arith.constant 0 : i32
    return %arg0, %c0_i32, %c0_i32_0, %c0_i32_1 : i32, i32, i32, i32
  }
  func.func @transform_1(%arg0: i32, %arg1: i32) -> (i32, i32, i32) {
    %c0_i32 = arith.constant 0 : i32
    %c0_i32_0 = arith.constant 0 : i32
    return %arg0, %c0_i32, %arg1 : i32, i32, i32
  }
  func.func @transform_2(%arg0: i32, %arg1: i32) -> (i32, i32, i32) {
    %c1_i32 = arith.constant 1 : i32
    %0 = arith.addi %arg1, %c1_i32 : i32
    %c3_i32 = arith.constant 3 : i32
    %1 = arith.muli %0, %c3_i32 : i32
    %c0_i32 = arith.constant 0 : i32
    %c0_i32_0 = arith.constant 0 : i32
    return %arg0, %c0_i32, %1 : i32, i32, i32
  }
  func.func @transform_3(%arg0: i32, %arg1: i32) -> (i32, i32, i32) {
    %c0_i32 = arith.constant 0 : i32
    %c0_i32_0 = arith.constant 0 : i32
    return %arg0, %c0_i32, %arg1 : i32, i32, i32
  }
  func.func @transform_4(%arg0: i32, %arg1: i32) -> (i32, i32, i32) {
    %c0_i32 = arith.constant 0 : i32
    %c0_i32_0 = arith.constant 0 : i32
    return %arg0, %c0_i32, %arg1 : i32, i32, i32
  }
}

</mosaic_0001>

<llo_original>
// kernel: squeeze.3
$region0: #{squeeze.3}
  %s0 = inlined_call_operand.vmem [shape: bf16[64,4], index: 0, kind: input, shape index: {}]
  %s1 = inlined_call_operand.vmem [shape: bf16[4,16,4], index: 1, kind: output, shape index: {}]
  $region1: #{squeeze.3} parent=0
    #allocation0 [shape = 'u8[16384]{0}', space=vmem, size = 0x4000, scoped, tag = 'scoped mem for output reshape']
    #allocation1 [shape = 'u8[4096]{0}', space=vmem, size = 0x1000, scoped, tag = 'scoped mem for input reshape']
    %s3 = ssub.s32 16, 1
    %s4 = sshrl.u32 %s3, 1
    %s5 = sor.u32 %s3, %s4
    %s6 = sand.u32 %s5, 85
    %s7 = sshrl.u32 %s6, 1
    %s8 = sor.u32 %s6, %s7
    %s9 = sand.u32 51, %s8
    %s10 = sshrl.u32 %s9, 2
    %s11 = sor.u32 %s9, %s10
    %s12 = sand.u32 15, %s11
    %v13 = vld [vmem:[%s0] sm:%s12]
    %v14 = vunpack.c.l.bf16 %v13
    %v15 = vunpack.c.h.bf16 %v13
    %16 = vst [vmem:[#allocation1] sm:%s3] %v14
    %v17 = vld [vmem:[#allocation1] sm:$0xf]
    %vm18 = vcmask 130048
    %19 = vst.msk [vmem:[#allocation0] ss:$8 sm:$0xf] %vm18, %v17
    %v20 = vld [vmem:[#allocation1] sm:$0xf]
    %21 = vrot.lane.b32.xlu0 %v20, 112
    %v22 = vpop.permute.xlu0 %21
    %vm23 = vcmask 130048
    %s24 = scalar_lea.vmem [#allocation0], 1
    %25 = vst.msk [vmem:[%s24] ss:$8 sm:$0xf] %vm23, %v22
    %v26 = vld [vmem:[#allocation1] sm:$0xf]
    %27 = vrot.lane.b32.xlu0 %v26, 96
    %v28 = vpop.permute.xlu0 %27
    %vm29 = vcmask 130048
    %s30 = scalar_lea.vmem [#allocation0], 2
    %31 = vst.msk [vmem:[%s30] ss:$8 sm:$0xf] %vm29, %v28
    %v32 = vld [vmem:[#allocation1] sm:$0xf]
    %33 = vrot.lane.b32.xlu0 %v32, 80
    %v34 = vpop.permute.xlu0 %33
    %vm35 = vcmask 130048
    %s36 = scalar_lea.vmem [#allocation0], 3
    %37 = vst.msk [vmem:[%s36] ss:$8 sm:$0xf] %vm35, %v34
    %s39 = ssub.s32 16, 1
    %v40 = vld [vmem:[#allocation0] sm:%s39]
    %v41 = vpack.c.bf16 0.0, %v40
    %s43 = ssub.s32 4, 1
    %44 = vst [vmem:[%s1] sm:%s43] %v41
    %s45 = scalar_lea.vmem [#allocation0], 8
    %v46 = vld [vmem:[%s45] sm:%s39]
    %v47 = vpack.c.bf16 0.0, %v46
    %s49 = ssub.s32 4, 1
    %s50 = scalar_lea.vmem %s1, 2
    %51 = vst [vmem:[%s50] sm:%s49] %v47
    %s52 = scalar_lea.vmem [#allocation0], 16
    %v53 = vld [vmem:[%s52] sm:%s39]
    %v54 = vpack.c.bf16 0.0, %v53
    %s56 = ssub.s32 4, 1
    %s57 = scalar_lea.vmem %s1, 4
    %58 = vst [vmem:[%s57] sm:%s56] %v54
    %s59 = scalar_lea.vmem [#allocation0], 24
    %v60 = vld [vmem:[%s59] sm:%s39]
    %v61 = vpack.c.bf16 0.0, %v60
    %s63 = ssub.s32 4, 1
    %s64 = scalar_lea.vmem %s1, 6
    %65 = vst [vmem:[%s64] sm:%s63] %v61

// kernel: drconv2d_phy_forward.1
$region0: #{drconv2d_phy_forward.1}
  #allocation0 [shape = 'u32[]', space=smem, size = 0x4, offset = 0x4, fixed_abs, tag = 'smem constant byte address 0x4 - core index']
  #allocation1 [shape = 'u32[72,128]{1,0:T(1,128)}', space=vmem, size = 0x9000, scoped, tag = 'internal scratch']
  %s0 = inlined_call_operand.vmem [shape: bf16[2,9,32,8], index: 0, kind: input, shape index: {}]
  %s1 = inlined_call_operand.vmem [shape: bf16[2,8,512], index: 1, kind: input, shape index: {}, may-alias: {1,2}]
  %s2 = inlined_call_operand.vmem [shape: bf16[2,8,512], index: 2, kind: input, shape index: {}, may-alias: {1,2}]
  %s3 = inlined_call_operand.vmem [shape: bf16[2,4,384], index: 3, kind: input, shape index: {}]
  %s4 = inlined_call_operand.vmem [shape: f32[2,8,384], index: 4, kind: output, shape index: {}]
  %s5 = sld [smem:[#allocation0]]
  $region49: #{drconv2d_phy_forward.1} parent=0
    _
  %s7 = ssub.s32 1, %s5
  %s8 = scalar_select 0, %s7, %s5
  loop: start=0, step=1, limit=4
  $region2: #{drconv2d_phy_forward.1} parent=0 // loop_pre_header
    _
  $region3: #{drconv2d_phy_forward.1} parent=0 // loop_header
    %s10 = sphi 0, %s14
    %p11 = scmp.ge.s32.totalorder %s10, 4
    %s17 = sphi 0, %s29
    %s18 = sphi 0, %s25
    %s19 = sphi 0, %s17
    %s20 = sphi 0, %s18
    %s21 = sphi 0, %s19
    %s22 = sphi 0, %s20
    %s32 = sphi 0, %s34
    %s35 = sphi 0, %s32
    %s36 = sphi 0, %s35
    %s52 = sphi 0, %s36
    %s60 = sphi 0, %s62
    %s63 = sphi 0, %s60
    %s64 = sphi 0, %s63
    %s80 = sphi 0, %s64
    %s92 = sphi 0, %s94
    %s95 = sphi 0, %s92
    %s96 = sphi 0, %s95
    %s112 = sphi 0, %s96
    %s120 = sphi 0, %s122
    %s123 = sphi 0, %s120
    %s124 = sphi 0, %s123
    %s140 = sphi 0, %s124
    %s148 = sphi 0, %s150
    %s151 = sphi 0, %s148
    %s152 = sphi 0, %s151
    %s168 = sphi 0, %s152
  $region4: #{drconv2d_phy_forward.1} parent=0 // loop_header_branch
    %13 = sbr.rel (%p11) target = $region8
  $region5: #{drconv2d_phy_forward.1} parent=0 // loop_body
    %s15 = ssub.s32 %s10, 1
    %s16 = ssub.s32 %s10, 2
    %s23 = sadd.s32 1, %s18
    %p24 = scmp.ge.s32.totalorder %s23, 1
    %s25 = scalar_select %p24, 0, %s23
    %s26 = sadd.s32 1, %s17
    %s27 = scalar_select %p24, %s26, %s17
    %p28 = scmp.ge.s32.totalorder %s27, 2
    %s29 = scalar_select %p28, 0, %s27
    %s30 = ssub.s32 %s17, %s29
    %p31 = scmp.eq.s32.totalorder %s30, 0
    %s33 = sadd.s32 %s32, 1
    %s34 = scalar_select %p31, %s32, %s33
    %p37 = pneg %p31
    %p38 = scmp.eq.s32.totalorder %s10, 1
    %p39 = por %p37, %p38
    %p40 = scmp.ne.s32.totalorder %s32, %s35
    %p41 = scmp.eq.s32.totalorder %s10, 0
    %p42 = por %p40, %p41
    %p43 = scmp.ne.s32.totalorder %s32, %s35
    %p44 = scmp.eq.s32.totalorder %s15, 1
    %p45 = por %p43, %p44
    %p46 = scmp.ne.s32.totalorder %s35, %s36
    %p47 = scmp.eq.s32.totalorder %s15, 0
    %p48 = por %p46, %p47
    %p49 = scmp.ne.s32.totalorder %s35, %s36
    %p50 = scmp.eq.s32.totalorder %s16, 1
    %p51 = por %p49, %p50
    %p53 = scmp.ne.s32.totalorder %s36, %s52
    %p54 = scmp.eq.s32.totalorder %s16, 0
    %p55 = por %p53, %p54
    %s56 = ssub.s32 %s17, %s29
    %s57 = ssub.s32 %s18, %s25
    %s58 = sor.u32 %s56, %s57
    %p59 = scmp.eq.s32.totalorder %s58, 0
    %s61 = sadd.s32 %s60, 1
    %s62 = scalar_select %p59, %s60, %s61
    %p65 = pneg %p59
    %p66 = scmp.eq.s32.totalorder %s10, 1
    %p67 = por %p65, %p66
    %p68 = scmp.ne.s32.totalorder %s60, %s63
    %p69 = scmp.eq.s32.totalorder %s10, 0
    %p70 = por %p68, %p69
    %p71 = scmp.ne.s32.totalorder %s60, %s63
    %p72 = scmp.eq.s32.totalorder %s15, 1
    %p73 = por %p71, %p72
    %p74 = scmp.ne.s32.totalorder %s63, %s64
    %p75 = scmp.eq.s32.totalorder %s15, 0
    %p76 = por %p74, %p75
    %p77 = scmp.ne.s32.totalorder %s63, %s64
    %p78 = scmp.eq.s32.totalorder %s16, 1
    %p79 = por %p77, %p78
    %p81 = scmp.ne.s32.totalorder %s64, %s80
    %p82 = scmp.eq.s32.totalorder %s16, 0
    %p83 = por %p81, %p82
    %s84 = sadd.s32 %s18, 1
    %s85 = smul.u32 %s84, 3
    %s86 = sadd.s32 %s25, 1
    %s87 = smul.u32 %s86, 3
    %s88 = ssub.s32 %s17, %s29
    %s89 = ssub.s32 %s85, %s87
    %s90 = sor.u32 %s88, %s89
    %p91 = scmp.eq.s32.totalorder %s90, 0
    %s93 = sadd.s32 %s92, 1
    %s94 = scalar_select %p91, %s92, %s93
    %p97 = pneg %p91
    %p98 = scmp.eq.s32.totalorder %s10, 1
    %p99 = por %p97, %p98
    %p100 = scmp.ne.s32.totalorder %s92, %s95
    %p101 = scmp.eq.s32.totalorder %s10, 0
    %p102 = por %p100, %p101
    %p103 = scmp.ne.s32.totalorder %s92, %s95
    %p104 = scmp.eq.s32.totalorder %s15, 1
    %p105 = por %p103, %p104
    %p106 = scmp.ne.s32.totalorder %s95, %s96
    %p107 = scmp.eq.s32.totalorder %s15, 0
    %p108 = por %p106, %p107
    %p109 = scmp.ne.s32.totalorder %s95, %s96
    %p110 = scmp.eq.s32.totalorder %s16, 1
    %p111 = por %p109, %p110
    %p113 = scmp.ne.s32.totalorder %s96, %s112
    %p114 = scmp.eq.s32.totalorder %s16, 0
    %p115 = por %p113, %p114
    %s116 = ssub.s32 %s17, %s29
    %s117 = ssub.s32 %s18, %s25
    %s118 = sor.u32 %s116, %s117
    %p119 = scmp.eq.s32.totalorder %s118, 0
    %s121 = sadd.s32 %s120, 1
    %s122 = scalar_select %p119, %s120, %s121
    %p125 = pneg %p119
    %p126 = scmp.eq.s32.totalorder %s10, 1
    %p127 = por %p125, %p126
    %p128 = scmp.ne.s32.totalorder %s120, %s123
    %p129 = scmp.eq.s32.totalorder %s10, 0
    %p130 = por %p128, %p129
    %p131 = scmp.ne.s32.totalorder %s120, %s123
    %p132 = scmp.eq.s32.totalorder %s15, 1
    %p133 = por %p131, %p132
    %p134 = scmp.ne.s32.totalorder %s123, %s124
    %p135 = scmp.eq.s32.totalorder %s15, 0
    %p136 = por %p134, %p135
    %p137 = scmp.ne.s32.totalorder %s123, %s124
    %p138 = scmp.eq.s32.totalorder %s16, 1
    %p139 = por %p137, %p138
    %p141 = scmp.ne.s32.totalorder %s124, %s140
    %p142 = scmp.eq.s32.totalorder %s16, 0
    %p143 = por %p141, %p142
    %s144 = ssub.s32 %s17, %s29
    %s145 = ssub.s32 %s18, %s25
    %s146 = sor.u32 %s144, %s145
    %p147 = scmp.eq.s32.totalorder %s146, 0
    %s149 = sadd.s32 %s148, 1
    %s150 = scalar_select %p147, %s148, %s149
    %p153 = pneg %p147
    %p154 = scmp.eq.s32.totalorder %s10, 1
    %p155 = por %p153, %p154
    %p156 = scmp.ne.s32.totalorder %s148, %s151
    %p157 = scmp.eq.s32.totalorder %s10, 0
    %p158 = por %p156, %p157
    %p159 = scmp.ne.s32.totalorder %s148, %s151
    %p160 = scmp.eq.s32.totalorder %s15, 1
    %p161 = por %p159, %p160
    %p162 = scmp.ne.s32.totalorder %s151, %s152
    %p163 = scmp.eq.s32.totalorder %s15, 0
    %p164 = por %p162, %p163
    %p165 = scmp.ne.s32.totalorder %s151, %s152
    %p166 = scmp.eq.s32.totalorder %s16, 1
    %p167 = por %p165, %p166
    %p169 = scmp.ne.s32.totalorder %s152, %s168
    %p170 = scmp.eq.s32.totalorder %s16, 0
    %p171 = por %p169, %p170
    %p172 = scmp.le.s32.totalorder 1, %s10
    %p173 = scmp.lt.s32.totalorder %s10, 3
    %p174 = pnand %p172, %p173
    %p175 = pneg %p174
    // Predicated region
    $region9: #{drconv2d_phy_forward.1} parent=5 // pred_check
      _
    $region10: #{drconv2d_phy_forward.1} parent=5 // pred_check_branch
      %177 = sbr.rel (%p174) target = $region12
    $region11: #{drconv2d_phy_forward.1} parent=5 // pred_region
      %s178 = ssub.s32 %s10, 1
    $region12: #{drconv2d_phy_forward.1} parent=5 // pred_fallthru
      _
    %p179 = scmp.lt.s32.totalorder %s10, 2
    // Predicated region
    $region13: #{drconv2d_phy_forward.1} parent=5 // pred_check
      %p180 = pneg %p179
    $region14: #{drconv2d_phy_forward.1} parent=5 // pred_check_branch
      %182 = sbr.rel (%p180) target = $region16
    $region15: #{drconv2d_phy_forward.1} parent=5 // pred_region
      // Predicated region
      $region17: #{drconv2d_phy_forward.1} parent=15 // pred_check
        %p183 = pneg %p42
      $region18: #{drconv2d_phy_forward.1} parent=15 // pred_check_branch
        %185 = sbr.rel (%p183) target = $region20
      $region19: #{drconv2d_phy_forward.1} parent=15 // pred_region
        %p186 = scmp.lt.s32.totalorder %s17, 1
        %s187 = scalar_select %p186, %s17, 1
        %s188 = smul.addr %s187, 36
        %s189 = smul.addr %s188, 4
        %s190 = scalar_lea.vmem %s0, %s189
      $region20: #{drconv2d_phy_forward.1} parent=15 // pred_fallthru
        _
      // Predicated region
      $region21: #{drconv2d_phy_forward.1} parent=15 // pred_check
        %p191 = pneg %p70
      $region22: #{drconv2d_phy_forward.1} parent=15 // pred_check_branch
        %193 = sbr.rel (%p191) target = $region24
      $region23: #{drconv2d_phy_forward.1} parent=15 // pred_region
        %s194 = smul.u32 3, %s18
        %s195 = ssub.s32 4, %s194
        %p196 = scmp.lt.s32.totalorder %s195, 3
        %s197 = scalar_select %p196, %s195, 3
        %s198 = smul.u32 4, %s197
        %p199 = scmp.lt.s32.totalorder %s17, 1
        %s200 = scalar_select %p199, %s17, 1
        %p201 = scmp.lt.s32.totalorder %s194, 3
        %s202 = scalar_select %p201, %s194, 3
        %s203 = smul.addr %s200, 4
        %s204 = sadd.s32 %s202, %s203
        %s205 = smul.addr %s204, 4
        %s206 = scalar_lea.vmem %s1, %s205
        %s207 = smul.u32 3, %s18
        %s208 = ssub.s32 4, %s207
        %p209 = scmp.lt.s32.totalorder %s208, 3
        %s210 = scalar_select %p209, %s208, 3
        %s211 = smul.u32 4, %s210
      $region24: #{drconv2d_phy_forward.1} parent=15 // pred_fallthru
        _
      // Predicated region
      $region25: #{drconv2d_phy_forward.1} parent=15 // pred_check
        %p212 = pneg %p102
      $region26: #{drconv2d_phy_forward.1} parent=15 // pred_check_branch
        %214 = sbr.rel (%p212) target = $region28
      $region27: #{drconv2d_phy_forward.1} parent=15 // pred_region
        %s215 = sadd.s32 %s18, 1
        %s216 = smul.u32 %s215, 3
        %p217 = scmp.lt.s32.totalorder %s17, 1
        %s218 = scalar_select %p217, %s17, 1
        %p219 = scmp.lt.s32.totalorder %s216, 3
        %s220 = scalar_select %p219, %s216, 3
        %s221 = smul.addr %s218, 4
        %s222 = sadd.s32 %s220, %s221
        %s223 = smul.addr %s222, 4
        %s224 = scalar_lea.vmem %s2, %s223
        %s225 = sadd.s32 %s18, 1
        %s226 = smul.u32 %s225, 3
      $region28: #{drconv2d_phy_forward.1} parent=15 // pred_fallthru
        _
      // Predicated region
      $region29: #{drconv2d_phy_forward.1} parent=15 // pred_check
        %p227 = pneg %p130
      $region30: #{drconv2d_phy_forward.1} parent=15 // pred_check_branch
        %229 = sbr.rel (%p227) target = $region32
      $region31: #{drconv2d_phy_forward.1} parent=15 // pred_region
        %s230 = smul.u32 3, %s18
        %p231 = scmp.lt.s32.totalorder %s17, 1
        %s232 = scalar_select %p231, %s17, 1
        %p233 = scmp.lt.s32.totalorder %s230, 2
        %s234 = scalar_select %p233, %s230, 2
        %s235 = smul.addr %s232, 3
        %s236 = sadd.s32 %s234, %s235
        %s237 = smul.addr %s236, 2
        %s238 = scalar_lea.vmem %s3, %s237
        %s239 = smul.u32 3, %s18
      $region32: #{drconv2d_phy_forward.1} parent=15 // pred_fallthru
        _
    $region16: #{drconv2d_phy_forward.1} parent=5 // pred_fallthru
      _
    %p240 = scmp.le.s32.totalorder 1, %s10
    %p241 = scmp.lt.s32.totalorder %s10, 3
    %p242 = pnand %p240, %p241
    %p243 = pneg %p242
    // Predicated region
    $region33: #{drconv2d_phy_forward.1} parent=5 // pred_check
      _
    $region34: #{drconv2d_phy_forward.1} parent=5 // pred_check_branch
      %245 = sbr.rel (%p242) target = $region36
    $region35: #{drconv2d_phy_forward.1} parent=5 // pred_region
      %s246 = ssub.s32 %s10, 1
      %p247 = scmp.lt.s32.totalorder %s19, 1
      %s248 = scalar_select %p247, %s19, 1
      %s249 = smul.addr %s248, 36
      %s250 = smul.addr %s249, 4
      %s251 = scalar_lea.vmem %s0, %s250
      %p252 = pneg %p48
      %p253 = pneg %p45
      %s254 = smul.u32 3, %s20
      %s255 = ssub.s32 4, %s254
      %p256 = scmp.lt.s32.totalorder %s255, 3
      %s257 = scalar_select %p256, %s255, 3
      %s258 = smul.u32 4, %s257
      %p259 = scmp.lt.s32.totalorder %s19, 1
      %s260 = scalar_select %p259, %s19, 1
      %p261 = scmp.lt.s32.totalorder %s254, 3
      %s262 = scalar_select %p261, %s254, 3
      %s263 = smul.addr %s260, 4
      %s264 = sadd.s32 %s262, %s263
      %s265 = smul.addr %s264, 4
      %s266 = scalar_lea.vmem %s1, %s265
      %p267 = pneg %p76
      %p268 = pneg %p73
      %s269 = sadd.s32 %s20, 1
      %s270 = smul.u32 %s269, 3
      %p271 = scmp.lt.s32.totalorder %s19, 1
      %s272 = scalar_select %p271, %s19, 1
      %p273 = scmp.lt.s32.totalorder %s270, 3
      %s274 = scalar_select %p273, %s270, 3
      %s275 = smul.addr %s272, 4
      %s276 = sadd.s32 %s274, %s275
      %s277 = smul.addr %s276, 4
      %s278 = scalar_lea.vmem %s2, %s277
      %p279 = pneg %p108
      %p280 = pneg %p105
      %s281 = smul.u32 3, %s20
      %p282 = scmp.lt.s32.totalorder %s19, 1
      %s283 = scalar_select %p282, %s19, 1
      %p284 = scmp.lt.s32.totalorder %s281, 2
      %s285 = scalar_select %p284, %s281, 2
      %s286 = smul.addr %s283, 3
      %s287 = sadd.s32 %s285, %s286
      %s288 = smul.addr %s287, 2
      %s289 = scalar_lea.vmem %s3, %s288
      %p290 = pneg %p136
      %p291 = pneg %p133
      %p292 = pneg %p164
      %p293 = pneg %p161
      %s294 = smul.u32 3, %s20
      %p295 = scmp.lt.s32.totalorder %s19, 1
      %s296 = scalar_select %p295, %s19, 1
      %p297 = scmp.lt.s32.totalorder %s294, 2
      %s298 = scalar_select %p297, %s294, 2
      %s299 = smul.addr %s296, 3
      %s300 = sadd.s32 %s298, %s299
      %s301 = smul.addr %s300, 8
      %s302 = scalar_lea.vmem %s4, %s301
      %p303 = scmp.lt.s32.totalorder %s19, 1
      %s304 = scalar_select %p303, %s19, 1
      %s305 = smul.addr %s304, 36
      %s306 = smul.addr %s305, 4
      %s307 = scalar_lea.vmem %s0, %s306
      %s308 = smul.u32 3, %s20
      %s309 = ssub.s32 4, %s308
      %p310 = scmp.lt.s32.totalorder %s309, 3
      %s311 = scalar_select %p310, %s309, 3
      %s312 = smul.u32 4, %s311
      %p313 = scmp.lt.s32.totalorder %s19, 1
      %s314 = scalar_select %p313, %s19, 1
      %p315 = scmp.lt.s32.totalorder %s308, 3
      %s316 = scalar_select %p315, %s308, 3
      %s317 = smul.addr %s314, 4
      %s318 = sadd.s32 %s316, %s317
      %s319 = smul.addr %s318, 4
      %s320 = scalar_lea.vmem %s1, %s319
      %s321 = smul.u32 3, %s20
      %s322 = ssub.s32 4, %s321
      %p323 = scmp.lt.s32.totalorder %s322, 3
      %s324 = scalar_select %p323, %s322, 3
      %s325 = smul.u32 4, %s324
      %s326 = sadd.s32 %s20, 1
      %s327 = smul.u32 %s326, 3
      %p328 = scmp.lt.s32.totalorder %s19, 1
      %s329 = scalar_select %p328, %s19, 1
      %p330 = scmp.lt.s32.totalorder %s327, 3
      %s331 = scalar_select %p330, %s327, 3
      %s332 = smul.addr %s329, 4
      %s333 = sadd.s32 %s331, %s332
      %s334 = smul.addr %s333, 4
      %s335 = scalar_lea.vmem %s2, %s334
      %s336 = sadd.s32 %s20, 1
      %s337 = smul.u32 %s336, 3
      %s338 = smul.u32 3, %s20
      %p339 = scmp.lt.s32.totalorder %s19, 1
      %s340 = scalar_select %p339, %s19, 1
      %p341 = scmp.lt.s32.totalorder %s338, 2
      %s342 = scalar_select %p341, %s338, 2
      %s343 = smul.addr %s340, 3
      %s344 = sadd.s32 %s342, %s343
      %s345 = smul.addr %s344, 2
      %s346 = scalar_lea.vmem %s3, %s345
      %s347 = smul.u32 3, %s20
      %s348 = smul.u32 3, %s20
      %p349 = scmp.lt.s32.totalorder %s19, 1
      %s350 = scalar_select %p349, %s19, 1
      %p351 = scmp.lt.s32.totalorder %s348, 2
      %s352 = scalar_select %p351, %s348, 2
      %s353 = smul.addr %s350, 3
      %s354 = sadd.s32 %s352, %s353
      %s355 = smul.addr %s354, 8
      %s356 = scalar_lea.vmem %s4, %s355
      %s357 = smul.u32 3, %s20
      %v359 = vld [vmem:[%s320] sm:$0xff]
      %v360 = vld [vmem:[%s320 + $0x8] sm:$0xf]
      %v361 = vld [vmem:[%s335] sm:$0xf]
      %v364 = vunpack.c.l.b16 %v359
      %v365 = vunpack.c.h.b16 %v359
      %v366 = vunpack.c.l.b16 %v360
      %v367 = vpack.c.b16 %v364, %v364
      %v368 = vpack.c.b16 %v365, %v365
      %v369 = vpack.c.b16 %v366, %v366
      %v370 = vld [vmem:[%s307] sm:$0xf]
      %v371 = vld [vmem:[%s307 + $0x4] sm:$0xf]
      %v372 = vld [vmem:[%s307 + $0x8] sm:$0xf]
      %v373 = vld [vmem:[%s307 + $0xc] sm:$0xf]
      %s374 = scalar_lea.vmem %s307, 16
      %v375 = vld [vmem:[%s374] sm:$0xf]
      %v376 = vld [vmem:[%s374 + $0x4] sm:$0xf]
      %v377 = vld [vmem:[%s374 + $0x8] sm:$0xf]
      %v378 = vld [vmem:[%s374 + $0xc] sm:$0xf]
      %v383 = vunpack.c.l.b16 %v375
      %v384 = vunpack.c.l.b16 %v376
      %v385 = vunpack.c.l.b16 %v377
      %v386 = vunpack.c.l.b16 %v378
      %v387 = vpack.c.b16 %v384, %v383
      %v388 = vpack.c.b16 %v386, %v385
      %390 = vrot.lane.b32.xlu0 %v367, 127
      %v391 = vpop.permute.xlu0 %390
      %392 = vrot.lane.b32.xlu0 %v368, 127
      %v393 = vpop.permute.xlu0 %392
      %394 = vrot.lane.b32.xlu0 %v369, 127
      %v395 = vpop.permute.xlu0 %394
      %396 = vrot.lane.b32.xlu0 %v361, 127
      %v397 = vpop.permute.xlu0 %396
      %vm398 = vcmask 1039360
      %v399 = vsel %vm398, %v391, %v393
      %v400 = vsel %vm398, %v393, %v395
      %v401 = vsel %vm398, %v395, %v397
      %vm402 = vcmask 64512
      %v404 = vsel %vm402, %v387, 0
      %v407 = vsel %vm402, %v388, 0
      %vm409 = vcmask 1043456
      %v411 = vsel %vm409, %v399, 0
      %v414 = vsel %vm409, %v400, 0
      %v417 = vsel %vm409, %v401, 0
      %419 = vmatpush.bf16.msra.mxu0 0
      %420 = vmatpush.bf16.msra.mxu0 0
      %421 = vmatpush.bf16.msra.mxu0 0
      %422 = vmatpush.bf16.msra.mxu0 0
      %423 = vmatpush.bf16.msra.mxu0 0
      %424 = vmatpush.bf16.msra.mxu0 0
      %425 = vmatpush.bf16.msra.mxu0 0
      %426 = vmatpush.bf16.msra.mxu0 %v411
      %427 = vmatmul.bf16.gmra.mxu0 %v404
      %v428 = vpop.f32.mrf.mxu0
      %v429 = vadd.f32 0.0, %v428
      %v430 = vpop.f32.mrf.mxu0
      %v431 = vadd.f32 0.0, %v430
      %432 = vmatmul.bf16.gmra.mxu0 %v407
      %v433 = vpop.f32.mrf.mxu0
      %v434 = vadd.f32 0.0, %v433
      %v435 = vpop.f32.mrf.mxu0
      %v436 = vadd.f32 0.0, %v435
      %437 = vdwg.mxu0
      %438 = vmatpush.bf16.msra.mxu0 0
      %439 = vmatpush.bf16.msra.mxu0 0
      %440 = vmatpush.bf16.msra.mxu0 0
      %441 = vmatpush.bf16.msra.mxu0 0
      %442 = vmatpush.bf16.msra.mxu0 0
      %443 = vmatpush.bf16.msra.mxu0 0
      %444 = vmatpush.bf16.msra.mxu0 0
      %445 = vmatpush.bf16.msra.mxu0 %v414
      %446 = vmatmul.bf16.gmra.mxu0 %v404
      %v447 = vpop.f32.mrf.mxu0
      %v448 = vadd.f32 0.0, %v447
      %v449 = vpop.f32.mrf.mxu0
      %v450 = vadd.f32 0.0, %v449
      %451 = vmatmul.bf16.gmra.mxu0 %v407
      %v452 = vpop.f32.mrf.mxu0
      %v453 = vadd.f32 0.0, %v452
      %v454 = vpop.f32.mrf.mxu0
      %v455 = vadd.f32 0.0, %v454
      %456 = vdwg.mxu0
      %457 = vmatpush.bf16.msra.mxu0 0
      %458 = vmatpush.bf16.msra.mxu0 0
      %459 = vmatpush.bf16.msra.mxu0 0
      %460 = vmatpush.bf16.msra.mxu0 0
      %461 = vmatpush.bf16.msra.mxu0 0
      %462 = vmatpush.bf16.msra.mxu0 0
      %463 = vmatpush.bf16.msra.mxu0 0
      %464 = vmatpush.bf16.msra.mxu0 %v417
      %465 = vmatmul.bf16.gmra.mxu0 %v404
      %v466 = vpop.f32.mrf.mxu0
      %v467 = vadd.f32 0.0, %v466
      %v468 = vpop.f32.mrf.mxu0
      %v469 = vadd.f32 0.0, %v468
      %470 = vmatmul.bf16.gmra.mxu0 %v407
      %v471 = vpop.f32.mrf.mxu0
      %v472 = vadd.f32 0.0, %v471
      %v473 = vpop.f32.mrf.mxu0
      %v474 = vadd.f32 0.0, %v473
      %475 = vdwg.mxu0
      %v480 = vunpack.c.l.b16 %v370
      %v481 = vunpack.c.l.b16 %v371
      %v482 = vunpack.c.l.b16 %v372
      %v483 = vunpack.c.l.b16 %v373
      %v484 = vpack.c.b16 %v481, %v480
      %v485 = vpack.c.b16 %v483, %v482
      %v487 = vsel %vm402, %v484, 0
      %v490 = vsel %vm402, %v485, 0
      %v493 = vsel %vm409, %v367, 0
      %v496 = vsel %vm409, %v368, 0
      %v499 = vsel %vm409, %v369, 0
      %501 = vmatpush.bf16.msra.mxu0 0
      %502 = vmatpush.bf16.msra.mxu0 0
      %503 = vmatpush.bf16.msra.mxu0 0
      %504 = vmatpush.bf16.msra.mxu0 0
      %505 = vmatpush.bf16.msra.mxu0 0
      %506 = vmatpush.bf16.msra.mxu0 0
      %507 = vmatpush.bf16.msra.mxu0 0
      %508 = vmatpush.bf16.msra.mxu0 %v493
      %509 = vmatmul.bf16.gmra.mxu0 %v487
      %v510 = vpop.f32.mrf.mxu0
      %v511 = vadd.f32 %v429, %v510
      %v512 = vpop.f32.mrf.mxu0
      %v513 = vadd.f32 %v431, %v512
      %514 = vmatmul.bf16.gmra.mxu0 %v490
      %v515 = vpop.f32.mrf.mxu0
      %v516 = vadd.f32 %v434, %v515
      %v517 = vpop.f32.mrf.mxu0
      %v518 = vadd.f32 %v436, %v517
      %519 = vdwg.mxu0
      %520 = vmatpush.bf16.msra.mxu0 0
      %521 = vmatpush.bf16.msra.mxu0 0
      %522 = vmatpush.bf16.msra.mxu0 0
      %523 = vmatpush.bf16.msra.mxu0 0
      %524 = vmatpush.bf16.msra.mxu0 0
      %525 = vmatpush.bf16.msra.mxu0 0
      %526 = vmatpush.bf16.msra.mxu0 0
      %527 = vmatpush.bf16.msra.mxu0 %v496
      %528 = vmatmul.bf16.gmra.mxu0 %v487
      %v529 = vpop.f32.mrf.mxu0
      %v530 = vadd.f32 %v448, %v529
      %v531 = vpop.f32.mrf.mxu0
      %v532 = vadd.f32 %v450, %v531
      %533 = vmatmul.bf16.gmra.mxu0 %v490
      %v534 = vpop.f32.mrf.mxu0
      %v535 = vadd.f32 %v453, %v534
      %v536 = vpop.f32.mrf.mxu0
      %v537 = vadd.f32 %v455, %v536
      %538 = vdwg.mxu0
      %539 = vmatpush.bf16.msra.mxu0 0
      %540 = vmatpush.bf16.msra.mxu0 0
      %541 = vmatpush.bf16.msra.mxu0 0
      %542 = vmatpush.bf16.msra.mxu0 0
      %543 = vmatpush.bf16.msra.mxu0 0
      %544 = vmatpush.bf16.msra.mxu0 0
      %545 = vmatpush.bf16.msra.mxu0 0
      %546 = vmatpush.bf16.msra.mxu0 %v499
      %547 = vmatmul.bf16.gmra.mxu0 %v487
      %v548 = vpop.f32.mrf.mxu0
      %v549 = vadd.f32 %v467, %v548
      %v550 = vpop.f32.mrf.mxu0
      %v551 = vadd.f32 %v469, %v550
      %552 = vmatmul.bf16.gmra.mxu0 %v490
      %v553 = vpop.f32.mrf.mxu0
      %v554 = vadd.f32 %v472, %v553
      %v555 = vpop.f32.mrf.mxu0
      %v556 = vadd.f32 %v474, %v555
      %557 = vdwg.mxu0
      %s558 = scalar_lea.vmem %s307, 32
      %v559 = vld [vmem:[%s558] sm:$0xf]
      %v560 = vld [vmem:[%s558 + $0x4] sm:$0xf]
      %v561 = vld [vmem:[%s558 + $0x8] sm:$0xf]
      %v562 = vld [vmem:[%s558 + $0xc] sm:$0xf]
      %v567 = vunpack.c.l.b16 %v559
      %v568 = vunpack.c.l.b16 %v560
      %v569 = vunpack.c.l.b16 %v561
      %v570 = vunpack.c.l.b16 %v562
      %v571 = vpack.c.b16 %v568, %v567
      %v572 = vpack.c.b16 %v570, %v569
      %573 = vrot.lane.b32.xlu0 %v367, 126
      %v574 = vpop.permute.xlu0 %573
      %575 = vrot.lane.b32.xlu0 %v368, 126
      %v576 = vpop.permute.xlu0 %575
      %577 = vrot.lane.b32.xlu0 %v369, 126
      %v578 = vpop.permute.xlu0 %577
      %579 = vrot.lane.b32.xlu0 %v361, 126
      %v580 = vpop.permute.xlu0 %579
      %vm581 = vcmask 1031168
      %v582 = vsel %vm581, %v574, %v576
      %v583 = vsel %vm581, %v576, %v578
      %v584 = vsel %vm581, %v578, %v580
      %v586 = vsel %vm402, %v571, 0
      %v589 = vsel %vm402, %v572, 0
      %v592 = vsel %vm409, %v582, 0
      %v595 = vsel %vm409, %v583, 0
      %v598 = vsel %vm409, %v584, 0
      %600 = vmatpush.bf16.msra.mxu0 0
      %601 = vmatpush.bf16.msra.mxu0 0
      %602 = vmatpush.bf16.msra.mxu0 0
      %603 = vmatpush.bf16.msra.mxu0 0
      %604 = vmatpush.bf16.msra.mxu0 0
      %605 = vmatpush.bf16.msra.mxu0 0
      %606 = vmatpush.bf16.msra.mxu0 0
      %607 = vmatpush.bf16.msra.mxu0 %v592
      %608 = vmatmul.bf16.gmra.mxu0 %v586
      %v609 = vpop.f32.mrf.mxu0
      %v610 = vadd.f32 0.0, %v609
      %v611 = vpop.f32.mrf.mxu0
      %v612 = vadd.f32 0.0, %v611
      %613 = vmatmul.bf16.gmra.mxu0 %v589
      %v614 = vpop.f32.mrf.mxu0
      %v615 = vadd.f32 0.0, %v614
      %v616 = vpop.f32.mrf.mxu0
      %v617 = vadd.f32 0.0, %v616
      %618 = vdwg.mxu0
      %619 = vmatpush.bf16.msra.mxu0 0
      %620 = vmatpush.bf16.msra.mxu0 0
      %621 = vmatpush.bf16.msra.mxu0 0
      %622 = vmatpush.bf16.msra.mxu0 0
      %623 = vmatpush.bf16.msra.mxu0 0
      %624 = vmatpush.bf16.msra.mxu0 0
      %625 = vmatpush.bf16.msra.mxu0 0
      %626 = vmatpush.bf16.msra.mxu0 %v595
      %627 = vmatmul.bf16.gmra.mxu0 %v586
      %v628 = vpop.f32.mrf.mxu0
      %v629 = vadd.f32 0.0, %v628
      %v630 = vpop.f32.mrf.mxu0
      %v631 = vadd.f32 0.0, %v630
      %632 = vmatmul.bf16.gmra.mxu0 %v589
      %v633 = vpop.f32.mrf.mxu0
      %v634 = vadd.f32 0.0, %v633
      %v635 = vpop.f32.mrf.mxu0
      %v636 = vadd.f32 0.0, %v635
      %637 = vdwg.mxu0
      %638 = vmatpush.bf16.msra.mxu0 0
      %639 = vmatpush.bf16.msra.mxu0 0
      %640 = vmatpush.bf16.msra.mxu0 0
      %641 = vmatpush.bf16.msra.mxu0 0
      %642 = vmatpush.bf16.msra.mxu0 0
      %643 = vmatpush.bf16.msra.mxu0 0
      %644 = vmatpush.bf16.msra.mxu0 0
      %645 = vmatpush.bf16.msra.mxu0 %v598
      %646 = vmatmul.bf16.gmra.mxu0 %v586
      %v647 = vpop.f32.mrf.mxu0
      %v648 = vadd.f32 0.0, %v647
      %v649 = vpop.f32.mrf.mxu0
      %v650 = vadd.f32 0.0, %v649
      %651 = vmatmul.bf16.gmra.mxu0 %v589
      %v652 = vpop.f32.mrf.mxu0
      %v653 = vadd.f32 0.0, %v652
      %v654 = vpop.f32.mrf.mxu0
      %v655 = vadd.f32 0.0, %v654
      %656 = vdwg.mxu0
      %v657 = vadd.f32 %v511, %v610
      %v658 = vadd.f32 %v530, %v629
      %v659 = vadd.f32 %v549, %v648
      %v660 = vadd.f32 %v513, %v612
      %v661 = vadd.f32 %v532, %v631
      %v662 = vadd.f32 %v551, %v650
      %v663 = vadd.f32 %v516, %v615
      %v664 = vadd.f32 %v535, %v634
      %v665 = vadd.f32 %v554, %v653
      %v666 = vadd.f32 %v518, %v617
      %v667 = vadd.f32 %v537, %v636
      %v668 = vadd.f32 %v556, %v655
      %s669 = scalar_lea.vmem %s307, 48
      %v670 = vld [vmem:[%s669] sm:$0xf]
      %v671 = vld [vmem:[%s669 + $0x4] sm:$0xf]
      %v672 = vld [vmem:[%s669 + $0x8] sm:$0xf]
      %v673 = vld [vmem:[%s669 + $0xc] sm:$0xf]
      %v678 = vunpack.c.l.b16 %v670
      %v679 = vunpack.c.l.b16 %v671
      %v680 = vunpack.c.l.b16 %v672
      %v681 = vunpack.c.l.b16 %v673
      %v682 = vpack.c.b16 %v679, %v678
      %v683 = vpack.c.b16 %v681, %v680
      %684 = vrot.lane.b32.xlu0 %v367, 110
      %v685 = vpop.permute.xlu0 %684
      %686 = vrot.lane.b32.xlu0 %v368, 110
      %v687 = vpop.permute.xlu0 %686
      %688 = vrot.lane.b32.xlu0 %v369, 110
      %v689 = vpop.permute.xlu0 %688
      %690 = vrot.lane.b32.xlu0 %v361, 110
      %v691 = vpop.permute.xlu0 %690
      %vm692 = vcmask 900096
      %v693 = vsel %vm692, %v685, %v687
      %v694 = vsel %vm692, %v687, %v689
      %v695 = vsel %vm692, %v689, %v691
      %v697 = vsel %vm402, %v682, 0
      %v700 = vsel %vm402, %v683, 0
      %v703 = vsel %vm409, %v693, 0
      %v706 = vsel %vm409, %v694, 0
      %v709 = vsel %vm409, %v695, 0
      %711 = vmatpush.bf16.msra.mxu0 0
      %712 = vmatpush.bf16.msra.mxu0 0
      %713 = vmatpush.bf16.msra.mxu0 0
      %714 = vmatpush.bf16.msra.mxu0 0
      %715 = vmatpush.bf16.msra.mxu0 0
      %716 = vmatpush.bf16.msra.mxu0 0
      %717 = vmatpush.bf16.msra.mxu0 0
      %718 = vmatpush.bf16.msra.mxu0 %v703
      %719 = vmatmul.bf16.gmra.mxu0 %v697
      %v720 = vpop.f32.mrf.mxu0
      %v721 = vadd.f32 0.0, %v720
      %v722 = vpop.f32.mrf.mxu0
      %v723 = vadd.f32 0.0, %v722
      %724 = vmatmul.bf16.gmra.mxu0 %v700
      %v725 = vpop.f32.mrf.mxu0
      %v726 = vadd.f32 0.0, %v725
      %v727 = vpop.f32.mrf.mxu0
      %v728 = vadd.f32 0.0, %v727
      %729 = vdwg.mxu0
      %730 = vmatpush.bf16.msra.mxu0 0
      %731 = vmatpush.bf16.msra.mxu0 0
      %732 = vmatpush.bf16.msra.mxu0 0
      %733 = vmatpush.bf16.msra.mxu0 0
      %734 = vmatpush.bf16.msra.mxu0 0
      %735 = vmatpush.bf16.msra.mxu0 0
      %736 = vmatpush.bf16.msra.mxu0 0
      %737 = vmatpush.bf16.msra.mxu0 %v706
      %738 = vmatmul.bf16.gmra.mxu0 %v697
      %v739 = vpop.f32.mrf.mxu0
      %v740 = vadd.f32 0.0, %v739
      %v741 = vpop.f32.mrf.mxu0
      %v742 = vadd.f32 0.0, %v741
      %743 = vmatmul.bf16.gmra.mxu0 %v700
      %v744 = vpop.f32.mrf.mxu0
      %v745 = vadd.f32 0.0, %v744
      %v746 = vpop.f32.mrf.mxu0
      %v747 = vadd.f32 0.0, %v746
      %748 = vdwg.mxu0
      %749 = vmatpush.bf16.msra.mxu0 0
      %750 = vmatpush.bf16.msra.mxu0 0
      %751 = vmatpush.bf16.msra.mxu0 0
      %752 = vmatpush.bf16.msra.mxu0 0
      %753 = vmatpush.bf16.msra.mxu0 0
      %754 = vmatpush.bf16.msra.mxu0 0
      %755 = vmatpush.bf16.msra.mxu0 0
      %756 = vmatpush.bf16.msra.mxu0 %v709
      %757 = vmatmul.bf16.gmra.mxu0 %v697
      %v758 = vpop.f32.mrf.mxu0
      %v759 = vadd.f32 0.0, %v758
      %v760 = vpop.f32.mrf.mxu0
      %v761 = vadd.f32 0.0, %v760
      %762 = vmatmul.bf16.gmra.mxu0 %v700
      %v763 = vpop.f32.mrf.mxu0
      %v764 = vadd.f32 0.0, %v763
      %v765 = vpop.f32.mrf.mxu0
      %v766 = vadd.f32 0.0, %v765
      %767 = vdwg.mxu0
      %v768 = vadd.f32 %v657, %v721
      %v769 = vadd.f32 %v658, %v740
      %v770 = vadd.f32 %v659, %v759
      %v771 = vadd.f32 %v660, %v723
      %v772 = vadd.f32 %v661, %v742
      %v773 = vadd.f32 %v662, %v761
      %v774 = vadd.f32 %v663, %v726
      %v775 = vadd.f32 %v664, %v745
      %v776 = vadd.f32 %v665, %v764
      %v777 = vadd.f32 %v666, %v728
      %v778 = vadd.f32 %v667, %v747
      %v779 = vadd.f32 %v668, %v766
      %s780 = scalar_lea.vmem %s307, 64
      %v781 = vld [vmem:[%s780] sm:$0xf]
      %v782 = vld [vmem:[%s780 + $0x4] sm:$0xf]
      %v783 = vld [vmem:[%s780 + $0x8] sm:$0xf]
      %v784 = vld [vmem:[%s780 + $0xc] sm:$0xf]
      %v789 = vunpack.c.l.b16 %v781
      %v790 = vunpack.c.l.b16 %v782
      %v791 = vunpack.c.l.b16 %v783
      %v792 = vunpack.c.l.b16 %v784
      %v793 = vpack.c.b16 %v790, %v789
      %v794 = vpack.c.b16 %v792, %v791
      %795 = vrot.lane.b32.xlu0 %v367, 109
      %v796 = vpop.permute.xlu0 %795
      %797 = vrot.lane.b32.xlu0 %v368, 109
      %v798 = vpop.permute.xlu0 %797
      %799 = vrot.lane.b32.xlu0 %v369, 109
      %v800 = vpop.permute.xlu0 %799
      %801 = vrot.lane.b32.xlu0 %v361, 109
      %v802 = vpop.permute.xlu0 %801
      %vm803 = vcmask 891904
      %v804 = vsel %vm803, %v796, %v798
      %v805 = vsel %vm803, %v798, %v800
      %v806 = vsel %vm803, %v800, %v802
      %v808 = vsel %vm402, %v793, 0
      %v811 = vsel %vm402, %v794, 0
      %v814 = vsel %vm409, %v804, 0
      %v817 = vsel %vm409, %v805, 0
      %v820 = vsel %vm409, %v806, 0
      %822 = vmatpush.bf16.msra.mxu0 0
      %823 = vmatpush.bf16.msra.mxu0 0
      %824 = vmatpush.bf16.msra.mxu0 0
      %825 = vmatpush.bf16.msra.mxu0 0
      %826 = vmatpush.bf16.msra.mxu0 0
      %827 = vmatpush.bf16.msra.mxu0 0
      %828 = vmatpush.bf16.msra.mxu0 0
      %829 = vmatpush.bf16.msra.mxu0 %v814
      %830 = vmatmul.bf16.gmra.mxu0 %v808
      %v831 = vpop.f32.mrf.mxu0
      %v832 = vadd.f32 0.0, %v831
      %v833 = vpop.f32.mrf.mxu0
      %v834 = vadd.f32 0.0, %v833
      %835 = vmatmul.bf16.gmra.mxu0 %v811
      %v836 = vpop.f32.mrf.mxu0
      %v837 = vadd.f32 0.0, %v836
      %v838 = vpop.f32.mrf.mxu0
      %v839 = vadd.f32 0.0, %v838
      %840 = vdwg.mxu0
      %841 = vmatpush.bf16.msra.mxu0 0
      %842 = vmatpush.bf16.msra.mxu0 0
      %843 = vmatpush.bf16.msra.mxu0 0
      %844 = vmatpush.bf16.msra.mxu0 0
      %845 = vmatpush.bf16.msra.mxu0 0
      %846 = vmatpush.bf16.msra.mxu0 0
      %847 = vmatpush.bf16.msra.mxu0 0
      %848 = vmatpush.bf16.msra.mxu0 %v817
      %849 = vmatmul.bf16.gmra.mxu0 %v808
      %v850 = vpop.f32.mrf.mxu0
      %v851 = vadd.f32 0.0, %v850
      %v852 = vpop.f32.mrf.mxu0
      %v853 = vadd.f32 0.0, %v852
      %854 = vmatmul.bf16.gmra.mxu0 %v811
      %v855 = vpop.f32.mrf.mxu0
      %v856 = vadd.f32 0.0, %v855
      %v857 = vpop.f32.mrf.mxu0
      %v858 = vadd.f32 0.0, %v857
      %859 = vdwg.mxu0
      %860 = vmatpush.bf16.msra.mxu0 0
      %861 = vmatpush.bf16.msra.mxu0 0
      %862 = vmatpush.bf16.msra.mxu0 0
      %863 = vmatpush.bf16.msra.mxu0 0
      %864 = vmatpush.bf16.msra.mxu0 0
      %865 = vmatpush.bf16.msra.mxu0 0
      %866 = vmatpush.bf16.msra.mxu0 0
      %867 = vmatpush.bf16.msra.mxu0 %v820
      %868 = vmatmul.bf16.gmra.mxu0 %v808
      %v869 = vpop.f32.mrf.mxu0
      %v870 = vadd.f32 0.0, %v869
      %v871 = vpop.f32.mrf.mxu0
      %v872 = vadd.f32 0.0, %v871
      %873 = vmatmul.bf16.gmra.mxu0 %v811
      %v874 = vpop.f32.mrf.mxu0
      %v875 = vadd.f32 0.0, %v874
      %v876 = vpop.f32.mrf.mxu0
      %v877 = vadd.f32 0.0, %v876
      %878 = vdwg.mxu0
      %v879 = vadd.f32 %v768, %v832
      %v880 = vadd.f32 %v769, %v851
      %v881 = vadd.f32 %v770, %v870
      %v882 = vadd.f32 %v771, %v834
      %v883 = vadd.f32 %v772, %v853
      %v884 = vadd.f32 %v773, %v872
      %v885 = vadd.f32 %v774, %v837
      %v886 = vadd.f32 %v775, %v856
      %v887 = vadd.f32 %v776, %v875
      %v888 = vadd.f32 %v777, %v839
      %v889 = vadd.f32 %v778, %v858
      %v890 = vadd.f32 %v779, %v877
      %s891 = scalar_lea.vmem %s307, 80
      %v892 = vld [vmem:[%s891] sm:$0xf]
      %v893 = vld [vmem:[%s891 + $0x4] sm:$0xf]
      %v894 = vld [vmem:[%s891 + $0x8] sm:$0xf]
      %v895 = vld [vmem:[%s891 + $0xc] sm:$0xf]
      %v900 = vunpack.c.l.b16 %v892
      %v901 = vunpack.c.l.b16 %v893
      %v902 = vunpack.c.l.b16 %v894
      %v903 = vunpack.c.l.b16 %v895
      %v904 = vpack.c.b16 %v901, %v900
      %v905 = vpack.c.b16 %v903, %v902
      %906 = vrot.lane.b32.xlu0 %v367, 108
      %v907 = vpop.permute.xlu0 %906
      %908 = vrot.lane.b32.xlu0 %v368, 108
      %v909 = vpop.permute.xlu0 %908
      %910 = vrot.lane.b32.xlu0 %v369, 108
      %v911 = vpop.permute.xlu0 %910
      %912 = vrot.lane.b32.xlu0 %v361, 108
      %v913 = vpop.permute.xlu0 %912
      %vm914 = vcmask 883712
      %v915 = vsel %vm914, %v907, %v909
      %v916 = vsel %vm914, %v909, %v911
      %v917 = vsel %vm914, %v911, %v913
      %v919 = vsel %vm402, %v904, 0
      %v922 = vsel %vm402, %v905, 0
      %v925 = vsel %vm409, %v915, 0
      %v928 = vsel %vm409, %v916, 0
      %v931 = vsel %vm409, %v917, 0
      %933 = vmatpush.bf16.msra.mxu0 0
      %934 = vmatpush.bf16.msra.mxu0 0
      %935 = vmatpush.bf16.msra.mxu0 0
      %936 = vmatpush.bf16.msra.mxu0 0
      %937 = vmatpush.bf16.msra.mxu0 0
      %938 = vmatpush.bf16.msra.mxu0 0
      %939 = vmatpush.bf16.msra.mxu0 0
      %940 = vmatpush.bf16.msra.mxu0 %v925
      %941 = vmatmul.bf16.gmra.mxu0 %v919
      %v942 = vpop.f32.mrf.mxu0
      %v943 = vadd.f32 0.0, %v942
      %v944 = vpop.f32.mrf.mxu0
      %v945 = vadd.f32 0.0, %v944
      %946 = vmatmul.bf16.gmra.mxu0 %v922
      %v947 = vpop.f32.mrf.mxu0
      %v948 = vadd.f32 0.0, %v947
      %v949 = vpop.f32.mrf.mxu0
      %v950 = vadd.f32 0.0, %v949
      %951 = vdwg.mxu0
      %952 = vmatpush.bf16.msra.mxu0 0
      %953 = vmatpush.bf16.msra.mxu0 0
      %954 = vmatpush.bf16.msra.mxu0 0
      %955 = vmatpush.bf16.msra.mxu0 0
      %956 = vmatpush.bf16.msra.mxu0 0
      %957 = vmatpush.bf16.msra.mxu0 0
      %958 = vmatpush.bf16.msra.mxu0 0
      %959 = vmatpush.bf16.msra.mxu0 %v928
      %960 = vmatmul.bf16.gmra.mxu0 %v919
      %v961 = vpop.f32.mrf.mxu0
      %v962 = vadd.f32 0.0, %v961
      %v963 = vpop.f32.mrf.mxu0
      %v964 = vadd.f32 0.0, %v963
      %965 = vmatmul.bf16.gmra.mxu0 %v922
      %v966 = vpop.f32.mrf.mxu0
      %v967 = vadd.f32 0.0, %v966
      %v968 = vpop.f32.mrf.mxu0
      %v969 = vadd.f32 0.0, %v968
      %970 = vdwg.mxu0
      %971 = vmatpush.bf16.msra.mxu0 0
      %972 = vmatpush.bf16.msra.mxu0 0
      %973 = vmatpush.bf16.msra.mxu0 0
      %974 = vmatpush.bf16.msra.mxu0 0
      %975 = vmatpush.bf16.msra.mxu0 0
      %976 = vmatpush.bf16.msra.mxu0 0
      %977 = vmatpush.bf16.msra.mxu0 0
      %978 = vmatpush.bf16.msra.mxu0 %v931
      %979 = vmatmul.bf16.gmra.mxu0 %v919
      %v980 = vpop.f32.mrf.mxu0
      %v981 = vadd.f32 0.0, %v980
      %v982 = vpop.f32.mrf.mxu0
      %v983 = vadd.f32 0.0, %v982
      %984 = vmatmul.bf16.gmra.mxu0 %v922
      %v985 = vpop.f32.mrf.mxu0
      %v986 = vadd.f32 0.0, %v985
      %v987 = vpop.f32.mrf.mxu0
      %v988 = vadd.f32 0.0, %v987
      %989 = vdwg.mxu0
      %v990 = vadd.f32 %v879, %v943
      %v991 = vadd.f32 %v880, %v962
      %v992 = vadd.f32 %v881, %v981
      %v993 = vadd.f32 %v882, %v945
      %v994 = vadd.f32 %v883, %v964
      %v995 = vadd.f32 %v884, %v983
      %v996 = vadd.f32 %v885, %v948
      %v997 = vadd.f32 %v886, %v967
      %v998 = vadd.f32 %v887, %v986
      %v999 = vadd.f32 %v888, %v950
      %v1000 = vadd.f32 %v889, %v969
      %v1001 = vadd.f32 %v890, %v988
      %s1002 = scalar_lea.vmem %s307, 96
      %v1003 = vld [vmem:[%s1002] sm:$0xf]
      %v1004 = vld [vmem:[%s1002 + $0x4] sm:$0xf]
      %v1005 = vld [vmem:[%s1002 + $0x8] sm:$0xf]
      %v1006 = vld [vmem:[%s1002 + $0xc] sm:$0xf]
      %v1011 = vunpack.c.l.b16 %v1003
      %v1012 = vunpack.c.l.b16 %v1004
      %v1013 = vunpack.c.l.b16 %v1005
      %v1014 = vunpack.c.l.b16 %v1006
      %v1015 = vpack.c.b16 %v1012, %v1011
      %v1016 = vpack.c.b16 %v1014, %v1013
      %1017 = vrot.lane.b32.xlu0 %v367, 92
      %v1018 = vpop.permute.xlu0 %1017
      %1019 = vrot.lane.b32.xlu0 %v368, 92
      %v1020 = vpop.permute.xlu0 %1019
      %1021 = vrot.lane.b32.xlu0 %v369, 92
      %v1022 = vpop.permute.xlu0 %1021
      %1023 = vrot.lane.b32.xlu0 %v361, 92
      %v1024 = vpop.permute.xlu0 %1023
      %vm1025 = vcmask 752640
      %v1026 = vsel %vm1025, %v1018, %v1020
      %v1027 = vsel %vm1025, %v1020, %v1022
      %v1028 = vsel %vm1025, %v1022, %v1024
      %v1030 = vsel %vm402, %v1015, 0
      %v1033 = vsel %vm402, %v1016, 0
      %v1036 = vsel %vm409, %v1026, 0
      %v1039 = vsel %vm409, %v1027, 0
      %v1042 = vsel %vm409, %v1028, 0
      %1044 = vmatpush.bf16.msra.mxu0 0
      %1045 = vmatpush.bf16.msra.mxu0 0
      %1046 = vmatpush.bf16.msra.mxu0 0
      %1047 = vmatpush.bf16.msra.mxu0 0
      %1048 = vmatpush.bf16.msra.mxu0 0
      %1049 = vmatpush.bf16.msra.mxu0 0
      %1050 = vmatpush.bf16.msra.mxu0 0
      %1051 = vmatpush.bf16.msra.mxu0 %v1036
      %1052 = vmatmul.bf16.gmra.mxu0 %v1030
      %v1053 = vpop.f32.mrf.mxu0
      %v1054 = vadd.f32 0.0, %v1053
      %v1055 = vpop.f32.mrf.mxu0
      %v1056 = vadd.f32 0.0, %v1055
      %1057 = vmatmul.bf16.gmra.mxu0 %v1033
      %v1058 = vpop.f32.mrf.mxu0
      %v1059 = vadd.f32 0.0, %v1058
      %v1060 = vpop.f32.mrf.mxu0
      %v1061 = vadd.f32 0.0, %v1060
      %1062 = vdwg.mxu0
      %1063 = vmatpush.bf16.msra.mxu0 0
      %1064 = vmatpush.bf16.msra.mxu0 0
      %1065 = vmatpush.bf16.msra.mxu0 0
      %1066 = vmatpush.bf16.msra.mxu0 0
      %1067 = vmatpush.bf16.msra.mxu0 0
      %1068 = vmatpush.bf16.msra.mxu0 0
      %1069 = vmatpush.bf16.msra.mxu0 0
      %1070 = vmatpush.bf16.msra.mxu0 %v1039
      %1071 = vmatmul.bf16.gmra.mxu0 %v1030
      %v1072 = vpop.f32.mrf.mxu0
      %v1073 = vadd.f32 0.0, %v1072
      %v1074 = vpop.f32.mrf.mxu0
      %v1075 = vadd.f32 0.0, %v1074
      %1076 = vmatmul.bf16.gmra.mxu0 %v1033
      %v1077 = vpop.f32.mrf.mxu0
      %v1078 = vadd.f32 0.0, %v1077
      %v1079 = vpop.f32.mrf.mxu0
      %v1080 = vadd.f32 0.0, %v1079
      %1081 = vdwg.mxu0
      %1082 = vmatpush.bf16.msra.mxu0 0
      %1083 = vmatpush.bf16.msra.mxu0 0
      %1084 = vmatpush.bf16.msra.mxu0 0
      %1085 = vmatpush.bf16.msra.mxu0 0
      %1086 = vmatpush.bf16.msra.mxu0 0
      %1087 = vmatpush.bf16.msra.mxu0 0
      %1088 = vmatpush.bf16.msra.mxu0 0
      %1089 = vmatpush.bf16.msra.mxu0 %v1042
      %1090 = vmatmul.bf16.gmra.mxu0 %v1030
      %v1091 = vpop.f32.mrf.mxu0
      %v1092 = vadd.f32 0.0, %v1091
      %v1093 = vpop.f32.mrf.mxu0
      %v1094 = vadd.f32 0.0, %v1093
      %1095 = vmatmul.bf16.gmra.mxu0 %v1033
      %v1096 = vpop.f32.mrf.mxu0
      %v1097 = vadd.f32 0.0, %v1096
      %v1098 = vpop.f32.mrf.mxu0
      %v1099 = vadd.f32 0.0, %v1098
      %1100 = vdwg.mxu0
      %v1101 = vadd.f32 %v990, %v1054
      %v1102 = vadd.f32 %v991, %v1073
      %v1103 = vadd.f32 %v992, %v1092
      %v1104 = vadd.f32 %v993, %v1056
      %v1105 = vadd.f32 %v994, %v1075
      %v1106 = vadd.f32 %v995, %v1094
      %v1107 = vadd.f32 %v996, %v1059
      %v1108 = vadd.f32 %v997, %v1078
      %v1109 = vadd.f32 %v998, %v1097
      %v1110 = vadd.f32 %v999, %v1061
      %v1111 = vadd.f32 %v1000, %v1080
      %v1112 = vadd.f32 %v1001, %v1099
      %s1113 = scalar_lea.vmem %s307, 112
      %v1114 = vld [vmem:[%s1113] sm:$0xf]
      %v1115 = vld [vmem:[%s1113 + $0x4] sm:$0xf]
      %v1116 = vld [vmem:[%s1113 + $0x8] sm:$0xf]
      %v1117 = vld [vmem:[%s1113 + $0xc] sm:$0xf]
      %v1122 = vunpack.c.l.b16 %v1114
      %v1123 = vunpack.c.l.b16 %v1115
      %v1124 = vunpack.c.l.b16 %v1116
      %v1125 = vunpack.c.l.b16 %v1117
      %v1126 = vpack.c.b16 %v1123, %v1122
      %v1127 = vpack.c.b16 %v1125, %v1124
      %1128 = vrot.lane.b32.xlu0 %v367, 91
      %v1129 = vpop.permute.xlu0 %1128
      %1130 = vrot.lane.b32.xlu0 %v368, 91
      %v1131 = vpop.permute.xlu0 %1130
      %1132 = vrot.lane.b32.xlu0 %v369, 91
      %v1133 = vpop.permute.xlu0 %1132
      %1134 = vrot.lane.b32.xlu0 %v361, 91
      %v1135 = vpop.permute.xlu0 %1134
      %vm1136 = vcmask 744448
      %v1137 = vsel %vm1136, %v1129, %v1131
      %v1138 = vsel %vm1136, %v1131, %v1133
      %v1139 = vsel %vm1136, %v1133, %v1135
      %v1141 = vsel %vm402, %v1126, 0
      %v1144 = vsel %vm402, %v1127, 0
      %v1147 = vsel %vm409, %v1137, 0
      %v1150 = vsel %vm409, %v1138, 0
      %v1153 = vsel %vm409, %v1139, 0
      %1155 = vmatpush.bf16.msra.mxu0 0
      %1156 = vmatpush.bf16.msra.mxu0 0
      %1157 = vmatpush.bf16.msra.mxu0 0
      %1158 = vmatpush.bf16.msra.mxu0 0
      %1159 = vmatpush.bf16.msra.mxu0 0
      %1160 = vmatpush.bf16.msra.mxu0 0
      %1161 = vmatpush.bf16.msra.mxu0 0
      %1162 = vmatpush.bf16.msra.mxu0 %v1147
      %1163 = vmatmul.bf16.gmra.mxu0 %v1141
      %v1164 = vpop.f32.mrf.mxu0
      %v1165 = vadd.f32 0.0, %v1164
      %v1166 = vpop.f32.mrf.mxu0
      %v1167 = vadd.f32 0.0, %v1166
      %1168 = vmatmul.bf16.gmra.mxu0 %v1144
      %v1169 = vpop.f32.mrf.mxu0
      %v1170 = vadd.f32 0.0, %v1169
      %v1171 = vpop.f32.mrf.mxu0
      %v1172 = vadd.f32 0.0, %v1171
      %1173 = vdwg.mxu0
      %1174 = vmatpush.bf16.msra.mxu0 0
      %1175 = vmatpush.bf16.msra.mxu0 0
      %1176 = vmatpush.bf16.msra.mxu0 0
      %1177 = vmatpush.bf16.msra.mxu0 0
      %1178 = vmatpush.bf16.msra.mxu0 0
      %1179 = vmatpush.bf16.msra.mxu0 0
      %1180 = vmatpush.bf16.msra.mxu0 0
      %1181 = vmatpush.bf16.msra.mxu0 %v1150
      %1182 = vmatmul.bf16.gmra.mxu0 %v1141
      %v1183 = vpop.f32.mrf.mxu0
      %v1184 = vadd.f32 0.0, %v1183
      %v1185 = vpop.f32.mrf.mxu0
      %v1186 = vadd.f32 0.0, %v1185
      %1187 = vmatmul.bf16.gmra.mxu0 %v1144
      %v1188 = vpop.f32.mrf.mxu0
      %v1189 = vadd.f32 0.0, %v1188
      %v1190 = vpop.f32.mrf.mxu0
      %v1191 = vadd.f32 0.0, %v1190
      %1192 = vdwg.mxu0
      %1193 = vmatpush.bf16.msra.mxu0 0
      %1194 = vmatpush.bf16.msra.mxu0 0
      %1195 = vmatpush.bf16.msra.mxu0 0
      %1196 = vmatpush.bf16.msra.mxu0 0
      %1197 = vmatpush.bf16.msra.mxu0 0
      %1198 = vmatpush.bf16.msra.mxu0 0
      %1199 = vmatpush.bf16.msra.mxu0 0
      %1200 = vmatpush.bf16.msra.mxu0 %v1153
      %1201 = vmatmul.bf16.gmra.mxu0 %v1141
      %v1202 = vpop.f32.mrf.mxu0
      %v1203 = vadd.f32 0.0, %v1202
      %v1204 = vpop.f32.mrf.mxu0
      %v1205 = vadd.f32 0.0, %v1204
      %1206 = vmatmul.bf16.gmra.mxu0 %v1144
      %v1207 = vpop.f32.mrf.mxu0
      %v1208 = vadd.f32 0.0, %v1207
      %v1209 = vpop.f32.mrf.mxu0
      %v1210 = vadd.f32 0.0, %v1209
      %1211 = vdwg.mxu0
      %v1212 = vadd.f32 %v1101, %v1165
      %v1213 = vadd.f32 %v1102, %v1184
      %v1214 = vadd.f32 %v1103, %v1203
      %v1215 = vadd.f32 %v1104, %v1167
      %v1216 = vadd.f32 %v1105, %v1186
      %v1217 = vadd.f32 %v1106, %v1205
      %v1218 = vadd.f32 %v1107, %v1170
      %v1219 = vadd.f32 %v1108, %v1189
      %v1220 = vadd.f32 %v1109, %v1208
      %v1221 = vadd.f32 %v1110, %v1172
      %v1222 = vadd.f32 %v1111, %v1191
      %v1223 = vadd.f32 %v1112, %v1210
      %s1224 = scalar_lea.vmem %s307, 128
      %v1225 = vld [vmem:[%s1224] sm:$0xf]
      %v1226 = vld [vmem:[%s1224 + $0x4] sm:$0xf]
      %v1227 = vld [vmem:[%s1224 + $0x8] sm:$0xf]
      %v1228 = vld [vmem:[%s1224 + $0xc] sm:$0xf]
      %v1233 = vunpack.c.l.b16 %v1225
      %v1234 = vunpack.c.l.b16 %v1226
      %v1235 = vunpack.c.l.b16 %v1227
      %v1236 = vunpack.c.l.b16 %v1228
      %v1237 = vpack.c.b16 %v1234, %v1233
      %v1238 = vpack.c.b16 %v1236, %v1235
      %1239 = vrot.lane.b32.xlu0 %v367, 90
      %v1240 = vpop.permute.xlu0 %1239
      %1241 = vrot.lane.b32.xlu0 %v368, 90
      %v1242 = vpop.permute.xlu0 %1241
      %1243 = vrot.lane.b32.xlu0 %v369, 90
      %v1244 = vpop.permute.xlu0 %1243
      %1245 = vrot.lane.b32.xlu0 %v361, 90
      %v1246 = vpop.permute.xlu0 %1245
      %vm1247 = vcmask 736256
      %v1248 = vsel %vm1247, %v1240, %v1242
      %v1249 = vsel %vm1247, %v1242, %v1244
      %v1250 = vsel %vm1247, %v1244, %v1246
      %v1252 = vsel %vm402, %v1237, 0
      %v1255 = vsel %vm402, %v1238, 0
      %v1258 = vsel %vm409, %v1248, 0
      %v1261 = vsel %vm409, %v1249, 0
      %v1264 = vsel %vm409, %v1250, 0
      %1266 = vmatpush.bf16.msra.mxu0 0
      %1267 = vmatpush.bf16.msra.mxu0 0
      %1268 = vmatpush.bf16.msra.mxu0 0
      %1269 = vmatpush.bf16.msra.mxu0 0
      %1270 = vmatpush.bf16.msra.mxu0 0
      %1271 = vmatpush.bf16.msra.mxu0 0
      %1272 = vmatpush.bf16.msra.mxu0 0
      %1273 = vmatpush.bf16.msra.mxu0 %v1258
      %1274 = vmatmul.bf16.gmra.mxu0 %v1252
      %v1275 = vpop.f32.mrf.mxu0
      %v1276 = vadd.f32 0.0, %v1275
      %v1277 = vpop.f32.mrf.mxu0
      %v1278 = vadd.f32 0.0, %v1277
      %1279 = vmatmul.bf16.gmra.mxu0 %v1255
      %v1280 = vpop.f32.mrf.mxu0
      %v1281 = vadd.f32 0.0, %v1280
      %v1282 = vpop.f32.mrf.mxu0
      %v1283 = vadd.f32 0.0, %v1282
      %1284 = vdwg.mxu0
      %1285 = vmatpush.bf16.msra.mxu0 0
      %1286 = vmatpush.bf16.msra.mxu0 0
      %1287 = vmatpush.bf16.msra.mxu0 0
      %1288 = vmatpush.bf16.msra.mxu0 0
      %1289 = vmatpush.bf16.msra.mxu0 0
      %1290 = vmatpush.bf16.msra.mxu0 0
      %1291 = vmatpush.bf16.msra.mxu0 0
      %1292 = vmatpush.bf16.msra.mxu0 %v1261
      %1293 = vmatmul.bf16.gmra.mxu0 %v1252
      %v1294 = vpop.f32.mrf.mxu0
      %v1295 = vadd.f32 0.0, %v1294
      %v1296 = vpop.f32.mrf.mxu0
      %v1297 = vadd.f32 0.0, %v1296
      %1298 = vmatmul.bf16.gmra.mxu0 %v1255
      %v1299 = vpop.f32.mrf.mxu0
      %v1300 = vadd.f32 0.0, %v1299
      %v1301 = vpop.f32.mrf.mxu0
      %v1302 = vadd.f32 0.0, %v1301
      %1303 = vdwg.mxu0
      %1304 = vmatpush.bf16.msra.mxu0 0
      %1305 = vmatpush.bf16.msra.mxu0 0
      %1306 = vmatpush.bf16.msra.mxu0 0
      %1307 = vmatpush.bf16.msra.mxu0 0
      %1308 = vmatpush.bf16.msra.mxu0 0
      %1309 = vmatpush.bf16.msra.mxu0 0
      %1310 = vmatpush.bf16.msra.mxu0 0
      %1311 = vmatpush.bf16.msra.mxu0 %v1264
      %1312 = vmatmul.bf16.gmra.mxu0 %v1252
      %v1313 = vpop.f32.mrf.mxu0
      %v1314 = vadd.f32 0.0, %v1313
      %v1315 = vpop.f32.mrf.mxu0
      %v1316 = vadd.f32 0.0, %v1315
      %1317 = vmatmul.bf16.gmra.mxu0 %v1255
      %v1318 = vpop.f32.mrf.mxu0
      %v1319 = vadd.f32 0.0, %v1318
      %v1320 = vpop.f32.mrf.mxu0
      %v1321 = vadd.f32 0.0, %v1320
      %1322 = vdwg.mxu0
      %v1323 = vadd.f32 %v1212, %v1276
      %v1324 = vadd.f32 %v1213, %v1295
      %v1325 = vadd.f32 %v1214, %v1314
      %v1326 = vadd.f32 %v1215, %v1278
      %v1327 = vadd.f32 %v1216, %v1297
      %v1328 = vadd.f32 %v1217, %v1316
      %v1329 = vadd.f32 %v1218, %v1281
      %v1330 = vadd.f32 %v1219, %v1300
      %v1331 = vadd.f32 %v1220, %v1319
      %v1332 = vadd.f32 %v1221, %v1283
      %v1333 = vadd.f32 %v1222, %v1302
      %v1334 = vadd.f32 %v1223, %v1321
      %v1335 = vld [vmem:[%s346] sm:$0x3f]
      %v1336 = vunpack.c.l.bf16 %v1335
      %v1337 = vunpack.c.h.bf16 %v1335
      %v1340 = vperm.slane %v1336, 0
      %v1341 = vperm.slane %v1336, 4
      %v1342 = vperm.slane %v1337, 0
      %v1346 = vperm.slane %v1340, 0
      %v1347 = vperm.slane %v1341, 0
      %v1348 = vperm.slane %v1342, 0
      %v1349 = vmul.f32 %v1323, %v1346
      %v1350 = vmul.f32 %v1324, %v1347
      %v1351 = vmul.f32 %v1325, %v1348
      %v1352 = vperm.slane %v1336, 1
      %v1353 = vperm.slane %v1336, 5
      %v1354 = vperm.slane %v1337, 1
      %v1358 = vperm.slane %v1352, 1
      %v1359 = vperm.slane %v1353, 1
      %v1360 = vperm.slane %v1354, 1
      %v1361 = vmul.f32 %v1326, %v1358
      %v1362 = vmul.f32 %v1327, %v1359
      %v1363 = vmul.f32 %v1328, %v1360
      %v1364 = vadd.f32 %v1349, %v1361
      %v1365 = vadd.f32 %v1350, %v1362
      %v1366 = vadd.f32 %v1351, %v1363
      %v1367 = vperm.slane %v1336, 2
      %v1368 = vperm.slane %v1336, 6
      %v1369 = vperm.slane %v1337, 2
      %v1373 = vperm.slane %v1367, 2
      %v1374 = vperm.slane %v1368, 2
      %v1375 = vperm.slane %v1369, 2
      %v1376 = vmul.f32 %v1329, %v1373
      %v1377 = vmul.f32 %v1330, %v1374
      %v1378 = vmul.f32 %v1331, %v1375
      %v1379 = vadd.f32 %v1364, %v1376
      %v1380 = vadd.f32 %v1365, %v1377
      %v1381 = vadd.f32 %v1366, %v1378
      %v1382 = vperm.slane %v1336, 3
      %v1383 = vperm.slane %v1336, 7
      %v1384 = vperm.slane %v1337, 3
      %v1388 = vperm.slane %v1382, 3
      %v1389 = vperm.slane %v1383, 3
      %v1390 = vperm.slane %v1384, 3
      %v1391 = vmul.f32 %v1332, %v1388
      %v1392 = vmul.f32 %v1333, %v1389
      %v1393 = vmul.f32 %v1334, %v1390
      %v1394 = vadd.f32 %v1379, %v1391
      %v1395 = vadd.f32 %v1380, %v1392
      %v1396 = vadd.f32 %v1381, %v1393
      %1397 = vst [vmem:[%s356] sm:$0xff] %v1394
      %1398 = vst [vmem:[%s356 + $0x8] sm:$0xff] %v1395
      %1399 = vst [vmem:[%s356 + $0x10] sm:$0xff] %v1396
      %s1400 = smul.u32 3, %s20
      %p1401 = scmp.lt.s32.totalorder %s19, 1
      %s1402 = scalar_select %p1401, %s19, 1
      %p1403 = scmp.lt.s32.totalorder %s1400, 2
      %s1404 = scalar_select %p1403, %s1400, 2
      %s1405 = smul.addr %s1402, 3
      %s1406 = sadd.s32 %s1404, %s1405
      %s1407 = smul.addr %s1406, 8
      %s1408 = scalar_lea.vmem %s4, %s1407
      // Predicated region
      $region37: #{drconv2d_phy_forward.1} parent=35 // pred_check
        %p1409 = pneg %p161
      $region38: #{drconv2d_phy_forward.1} parent=35 // pred_check_branch
        %1411 = sbr.rel (%p1409) target = $region40
      $region39: #{drconv2d_phy_forward.1} parent=35 // pred_region
        %s1412 = smul.u32 3, %s20
      $region40: #{drconv2d_phy_forward.1} parent=35 // pred_fallthru
        _
    $region36: #{drconv2d_phy_forward.1} parent=5 // pred_fallthru
      _
    %p1413 = scmp.le.s32.totalorder 2, %s10
    // Predicated region
    $region41: #{drconv2d_phy_forward.1} parent=5 // pred_check
      %p1414 = pneg %p1413
    $region42: #{drconv2d_phy_forward.1} parent=5 // pred_check_branch
      %1416 = sbr.rel (%p1414) target = $region44
    $region43: #{drconv2d_phy_forward.1} parent=5 // pred_region
      %s1417 = ssub.s32 %s10, 2
      // Predicated region
      $region45: #{drconv2d_phy_forward.1} parent=43 // pred_check
        %p1418 = pneg %p167
      $region46: #{drconv2d_phy_forward.1} parent=43 // pred_check_branch
        %1420 = sbr.rel (%p1418) target = $region48
      $region47: #{drconv2d_phy_forward.1} parent=43 // pred_region
        %s1421 = smul.u32 3, %s22
        %p1422 = scmp.lt.s32.totalorder %s21, 1
        %s1423 = scalar_select %p1422, %s21, 1
        %p1424 = scmp.lt.s32.totalorder %s1421, 2
        %s1425 = scalar_select %p1424, %s1421, 2
        %s1426 = smul.addr %s1423, 3
        %s1427 = sadd.s32 %s1425, %s1426
        %s1428 = smul.addr %s1427, 8
        %s1429 = scalar_lea.vmem %s4, %s1428
      $region48: #{drconv2d_phy_forward.1} parent=43 // pred_fallthru
        _
    $region44: #{drconv2d_phy_forward.1} parent=5 // pred_fallthru
      _
  $region6: #{drconv2d_phy_forward.1} parent=0 // loop_footer
    %s14 = sadd.s32 1, %s10
  $region7: #{drconv2d_phy_forward.1} parent=0 // loop_footer_branch
    %9 = sbr.rel target = $region3
  $region8: #{drconv2d_phy_forward.1} parent=0 // loop_exit
    _

</llo_original>
